<compile_context>
chip_gen: v5e
topology: v5e:2x2
jax: 0.10.0
libtpu: 0.0.40
codegen_flags: <defaults>
</compile_context>

<pallas_src>
import jax
import jax.numpy as jnp
from jax.experimental import pallas as pl
from jax.experimental.pallas import tpu as pltpu
import numpy as np

IMG_CHANNELS = 1
IMG_SIZE = 28
IN_FEATURES = IMG_CHANNELS * IMG_SIZE * IMG_SIZE  # 784
IN_PAD = 1024                                     # 4 clean 256-wide MXU K-tiles
H1 = 512
H2 = 256
OUT = 1
NEG_SLOPE = 0.2


def _discriminator_kernel(x_ref, w1_ref, b1_ref, w2_ref, b2_ref, w3_ref, b3_ref,
                          o_ref):
    # x: (TB, 1024) bf16 | w1: (1024, 512) bf16 | b1: (1, 512) f32
    # w2: (512, 256) bf16 | b2: (1, 256) f32 | w3: (1, 256) f32 | b3: (1,1) SMEM
    x = x_ref[...]

    # Linear 1 (bf16 MXU, f32 accumulation) + LeakyReLU(0.2)
    h1 = jnp.dot(x, w1_ref[...], preferred_element_type=jnp.float32) + b1_ref[...]
    h1 = jnp.where(h1 > 0, h1, NEG_SLOPE * h1)

    # Linear 2 + LeakyReLU(0.2)
    h2 = jnp.dot(h1.astype(jnp.bfloat16), w2_ref[...],
                 preferred_element_type=jnp.float32) + b2_ref[...]
    h2 = jnp.where(h2 > 0, h2, NEG_SLOPE * h2)

    # Linear 3 (out_features = 1): VPU multiply + cross-lane reduce instead of a
    # nearly-empty MXU pass; scalar bias comes from SMEM.
    logit = jnp.sum(h2 * w3_ref[...], axis=-1, keepdims=True) + b3_ref[0, 0]
    o_ref[...] = jax.nn.sigmoid(logit)


def discriminator_forward(img, params):
    """img: (B, 1, 28, 28) f32 NCHW. Returns (B, 1) f32 validity scores."""
    w1, b1, w2, b2, w3, b3 = params
    B = img.shape[0]

    # Flatten like torch .view(B, -1); activations carried as bf16.
    x = img.reshape(B, -1).astype(jnp.bfloat16)
    # Zero-pad contraction dim 784 -> 1024.
    x = jnp.pad(x, ((0, 0), (0, IN_PAD - IN_FEATURES)))

    # Batch tile: 128 for training-sized batches, else B rounded up to sublane 8.
    TB = 128 if B >= 128 else max(8, -(-B // 8) * 8)
    B_pad = -(-B // TB) * TB
    if B_pad != B:
        x = jnp.pad(x, ((0, B_pad - B), (0, 0)))
    num_tiles = B_pad // TB

    # bf16 weight storage (halves HBM traffic); w1 rows zero-padded to 1024.
    w1p = jnp.pad(w1.astype(jnp.bfloat16), ((0, IN_PAD - IN_FEATURES), (0, 0)))
    w2b = w2.astype(jnp.bfloat16)
    w3r = w3.reshape(1, H2).astype(jnp.float32)   # row layout for the VPU reduce
    b3s = b3.reshape(1, 1).astype(jnp.float32)    # scalar bias -> SMEM

    resident = lambda shape: pl.BlockSpec(shape, lambda i: (0, 0))

    out_pad = pl.pallas_call(
        _discriminator_kernel,
        out_shape=jax.ShapeDtypeStruct((B_pad, OUT), jnp.float32),
        grid=(num_tiles,),
        in_specs=[
            pl.BlockSpec((TB, IN_PAD), lambda i: (i, 0)),        # x tiles stream
            resident((IN_PAD, H1)),                              # w1 (VMEM-resident)
            resident((1, H1)),                                   # b1
            resident((H1, H2)),                                  # w2
            resident((1, H2)),                                   # b2
            resident((1, H2)),                                   # w3 row
            pl.BlockSpec(memory_space=pltpu.MemorySpace.SMEM),   # b3 scalar
        ],
        out_specs=pl.BlockSpec((TB, OUT), lambda i: (i, 0)),
        compiler_params=pltpu.CompilerParams(
            dimension_semantics=("parallel",),
            vmem_limit_bytes=16 << 20,
        ),
    )(x, w1p, b1.astype(jnp.float32), w2b, b2.astype(jnp.float32), w3r, b3s)

    return out_pad[:B]


def init_params(key):
    """Deterministic init matching torch.nn.Linear default (U[-1/sqrt(fan_in), +])."""
    def linear(k, fan_in, fan_out):
        kw, kb = jax.random.split(k)
        bound = 1.0 / np.sqrt(fan_in)
        w = jax.random.uniform(kw, (fan_in, fan_out), jnp.float32, -bound, bound)
        b = jax.random.uniform(kb, (1, fan_out), jnp.float32, -bound, bound)
        return w, b

    k1, k2, k3 = jax.random.split(key, 3)
    w1, b1 = linear(k1, IN_FEATURES, H1)
    w2, b2 = linear(k2, H1, H2)
    w3, b3 = linear(k3, H2, OUT)
    return (w1, b1, w2, b2, w3, b3)


def _reference_forward(img, params):
    """Pure-JAX reference with the same bf16 storage precision as the kernel."""
    w1, b1, w2, b2, w3, b3 = params
    x = img.reshape(img.shape[0], -1).astype(jnp.bfloat16).astype(jnp.float32)
    w1f = w1.astype(jnp.bfloat16).astype(jnp.float32)
    w2f = w2.astype(jnp.bfloat16).astype(jnp.float32)
    h = x @ w1f + b1
    h = jnp.where(h > 0, h, NEG_SLOPE * h)
    h = h.astype(jnp.bfloat16).astype(jnp.float32) @ w2f + b2
    h = jnp.where(h > 0, h, NEG_SLOPE * h)
    return jax.nn.sigmoid(h @ w3 + b3)


if __name__ == "__main__":
    key = jax.random.PRNGKey(0)
    kp, kx1, kx2 = jax.random.split(key, 3)
    params = init_params(kp)

    # Small batch (single tile, padded to 8 rows).
    img_small = jax.random.normal(kx1, (4, IMG_CHANNELS, IMG_SIZE, IMG_SIZE),
                                  dtype=jnp.float32)
    out_small = jax.block_until_ready(discriminator_forward(img_small, params))
    ref_small = jax.block_until_ready(_reference_forward(img_small, params))
    assert out_small.shape == (4, 1), out_small.shape
    np.testing.assert_allclose(np.asarray(out_small), np.asarray(ref_small),
                               rtol=1e-3, atol=1e-3)

    # Training-sized batch exercising the TB=128 multi-tile path.
    img_big = jax.random.normal(kx2, (256, IMG_CHANNELS, IMG_SIZE, IMG_SIZE),
                                dtype=jnp.float32)
    out_big = jax.block_until_ready(discriminator_forward(img_big, params))
    ref_big = jax.block_until_ready(_reference_forward(img_big, params))
    assert out_big.shape == (256, 1), out_big.shape
    np.testing.assert_allclose(np.asarray(out_big), np.asarray(ref_big),
                               rtol=1e-3, atol=1e-3)

    print("KERNEL_OK")
</pallas_src>

<mosaic_0001>
module attributes {stable_mosaic.version = 11 : i64} {
  func.func @_discriminator_kernel(%arg0: i32, %arg1: memref<8x1024xbf16, #tpu.memory_space<vmem>>, %arg2: memref<1024x512xbf16, #tpu.memory_space<vmem>>, %arg3: memref<1x512xf32, #tpu.memory_space<vmem>>, %arg4: memref<512x256xbf16, #tpu.memory_space<vmem>>, %arg5: memref<1x256xf32, #tpu.memory_space<vmem>>, %arg6: memref<1x256xf32, #tpu.memory_space<vmem>>, %arg7: memref<1x1xf32, #tpu.memory_space<smem>>, %arg8: memref<8x1xf32, #tpu.memory_space<vmem>>) attributes {dimension_semantics = [#tpu.dimension_semantics<parallel>], iteration_bounds = array<i64: 1>, scalar_prefetch = 0 : i64, scratch_operands = 0 : i64, tpu.core_type = #tpu.core_type<tc>, window_params = [{transform_indices = @transform_0, window_bounds = array<i64: 8, 1024>}, {pipeline_mode = #tpu.pipeline_mode<synchronous>, transform_indices = @transform_1, window_bounds = array<i64: 1024, 512>}, {pipeline_mode = #tpu.pipeline_mode<synchronous>, transform_indices = @transform_2, window_bounds = array<i64: 1, 512>}, {pipeline_mode = #tpu.pipeline_mode<synchronous>, transform_indices = @transform_3, window_bounds = array<i64: 512, 256>}, {pipeline_mode = #tpu.pipeline_mode<synchronous>, transform_indices = @transform_4, window_bounds = array<i64: 1, 256>}, {pipeline_mode = #tpu.pipeline_mode<synchronous>, transform_indices = @transform_5, window_bounds = array<i64: 1, 256>}, {transform_indices = @transform_6, window_bounds = array<i64: 1, 1>}, {transform_indices = @transform_7, window_bounds = array<i64: 8, 1>}]} {
    %c0 = arith.constant 0 : index
    %c0_0 = arith.constant 0 : index
    %0 = vector.load %arg1[%c0, %c0_0] : memref<8x1024xbf16, #tpu.memory_space<vmem>>, vector<8x1024xbf16>
    %c0_1 = arith.constant 0 : index
    %c0_2 = arith.constant 0 : index
    %1 = vector.load %arg2[%c0_1, %c0_2] : memref<1024x512xbf16, #tpu.memory_space<vmem>>, vector<1024x512xbf16>
    %cst = arith.constant dense<0.000000e+00> : vector<8x512xf32>
    %2 = tpu.matmul %0, %1, %cst {dimension_numbers = #tpu.dot_dimension_numbers<[1], [0], [0], [1], [0, 0, 1, 1], [], []>} : vector<8x1024xbf16>, vector<1024x512xbf16>, vector<8x512xf32> -> vector<8x512xf32>
    %c0_3 = arith.constant 0 : index
    %c0_4 = arith.constant 0 : index
    %3 = vector.load %arg3[%c0_3, %c0_4] : memref<1x512xf32, #tpu.memory_space<vmem>>, vector<1x512xf32>
    %4 = vector.broadcast %3 : vector<1x512xf32> to vector<8x512xf32>
    %5 = arith.addf %2, %4 : vector<8x512xf32>
    %cst_5 = arith.constant 0.000000e+00 : f32
    %6 = vector.broadcast %cst_5 : f32 to vector<8x512xf32>
    %7 = arith.cmpf ogt, %5, %6 : vector<8x512xf32>
    %cst_6 = arith.constant 2.000000e-01 : f32
    %8 = vector.broadcast %cst_6 : f32 to vector<8x512xf32>
    %9 = arith.mulf %8, %5 : vector<8x512xf32>
    %10 = arith.select %7, %5, %9 : vector<8x512xi1>, vector<8x512xf32>
    %11 = arith.truncf %10 : vector<8x512xf32> to vector<8x512xbf16>
    %c0_7 = arith.constant 0 : index
    %c0_8 = arith.constant 0 : index
    %12 = vector.load %arg4[%c0_7, %c0_8] : memref<512x256xbf16, #tpu.memory_space<vmem>>, vector<512x256xbf16>
    %cst_9 = arith.constant dense<0.000000e+00> : vector<8x256xf32>
    %13 = tpu.matmul %11, %12, %cst_9 {dimension_numbers = #tpu.dot_dimension_numbers<[1], [0], [0], [1], [0, 0, 1, 1], [], []>} : vector<8x512xbf16>, vector<512x256xbf16>, vector<8x256xf32> -> vector<8x256xf32>
    %c0_10 = arith.constant 0 : index
    %c0_11 = arith.constant 0 : index
    %14 = vector.load %arg5[%c0_10, %c0_11] : memref<1x256xf32, #tpu.memory_space<vmem>>, vector<1x256xf32>
    %15 = vector.broadcast %14 : vector<1x256xf32> to vector<8x256xf32>
    %16 = arith.addf %13, %15 : vector<8x256xf32>
    %cst_12 = arith.constant 0.000000e+00 : f32
    %17 = vector.broadcast %cst_12 : f32 to vector<8x256xf32>
    %18 = arith.cmpf ogt, %16, %17 : vector<8x256xf32>
    %cst_13 = arith.constant 2.000000e-01 : f32
    %19 = vector.broadcast %cst_13 : f32 to vector<8x256xf32>
    %20 = arith.mulf %19, %16 : vector<8x256xf32>
    %21 = arith.select %18, %16, %20 : vector<8x256xi1>, vector<8x256xf32>
    %c0_14 = arith.constant 0 : index
    %c0_15 = arith.constant 0 : index
    %22 = vector.load %arg6[%c0_14, %c0_15] : memref<1x256xf32, #tpu.memory_space<vmem>>, vector<1x256xf32>
    %23 = vector.broadcast %22 : vector<1x256xf32> to vector<8x256xf32>
    %24 = arith.mulf %21, %23 : vector<8x256xf32>
    %cst_16 = arith.constant dense<0.000000e+00> : vector<8xf32>
    %25 = vector.multi_reduction <add>, %24, %cst_16 [1] : vector<8x256xf32> to vector<8xf32>
    %26 = vector.shape_cast %25 : vector<8xf32> to vector<8x1xf32>
    %c0_17 = arith.constant 0 : index
    %c0_18 = arith.constant 0 : index
    %27 = memref.load %arg7[%c0_17, %c0_18] : memref<1x1xf32, #tpu.memory_space<smem>>
    %28 = vector.broadcast %27 : f32 to vector<8x1xf32>
    %29 = arith.addf %26, %28 : vector<8x1xf32>
    %30 = arith.negf %29 : vector<8x1xf32>
    %31 = math.exp %30 : vector<8x1xf32>
    %cst_19 = arith.constant 1.000000e+00 : f32
    %32 = vector.broadcast %cst_19 : f32 to vector<8x1xf32>
    %33 = arith.addf %32, %31 : vector<8x1xf32>
    %34 = arith.divf %32, %33 : vector<8x1xf32>
    %c0_20 = arith.constant 0 : index
    %c0_21 = arith.constant 0 : index
    %35 = vector.load %arg8[%c0_20, %c0_21] : memref<8x1xf32, #tpu.memory_space<vmem>>, vector<8x1xf32>
    tpu.vector_store %arg8[%c0_20, %c0_21], %34 {strides = array<i32>} : memref<8x1xf32, #tpu.memory_space<vmem>>, vector<8x1xf32>,
    return
  }
  func.func @transform_0(%arg0: i32) -> (i32, i32) {
    %c0_i32 = arith.constant 0 : i32
    %c0_i32_0 = arith.constant 0 : i32
    return %arg0, %c0_i32 : i32, i32
  }
  func.func @transform_1(%arg0: i32) -> (i32, i32) {
    %c0_i32 = arith.constant 0 : i32
    %c0_i32_0 = arith.constant 0 : i32
    %c0_i32_1 = arith.constant 0 : i32
    return %c0_i32, %c0_i32_0 : i32, i32
  }
  func.func @transform_2(%arg0: i32) -> (i32, i32) {
    %c0_i32 = arith.constant 0 : i32
    %c0_i32_0 = arith.constant 0 : i32
    %c0_i32_1 = arith.constant 0 : i32
    return %c0_i32, %c0_i32_0 : i32, i32
  }
  func.func @transform_3(%arg0: i32) -> (i32, i32) {
    %c0_i32 = arith.constant 0 : i32
    %c0_i32_0 = arith.constant 0 : i32
    %c0_i32_1 = arith.constant 0 : i32
    return %c0_i32, %c0_i32_0 : i32, i32
  }
  func.func @transform_4(%arg0: i32) -> (i32, i32) {
    %c0_i32 = arith.constant 0 : i32
    %c0_i32_0 = arith.constant 0 : i32
    %c0_i32_1 = arith.constant 0 : i32
    return %c0_i32, %c0_i32_0 : i32, i32
  }
  func.func @transform_5(%arg0: i32) -> (i32, i32) {
    %c0_i32 = arith.constant 0 : i32
    %c0_i32_0 = arith.constant 0 : i32
    %c0_i32_1 = arith.constant 0 : i32
    return %c0_i32, %c0_i32_0 : i32, i32
  }
  func.func @transform_6(%arg0: i32) -> (i32, i32) {
    %c0_i32 = arith.constant 0 : i32
    %c0_i32_0 = arith.constant 0 : i32
    %c0_i32_1 = arith.constant 0 : i32
    return %c0_i32, %c0_i32_0 : i32, i32
  }
  func.func @transform_7(%arg0: i32) -> (i32, i32) {
    %c0_i32 = arith.constant 0 : i32
    %c0_i32_0 = arith.constant 0 : i32
    return %arg0, %c0_i32 : i32, i32
  }
}

</mosaic_0001>

<llo_original>
// kernel: tpu_custom_call.1
$region0: #{tpu_custom_call.1}
  #allocation0 [shape = 'u32[]', space=smem, size = 0x4, offset = 0x4, fixed_abs, tag = 'smem constant byte address 0x4 - core index']
  #allocation1 [shape = 'u32[72,128]{1,0:T(1,128)}', space=vmem, size = 0x9000, scoped, tag = 'internal scratch']
  #allocation2 [shape = 'f32[1,1]{1,0:T(1,128)S(6)}', space=smem, size = 0x200, scoped, tag = 'scoped memory for tpu_custom_call.1']
  %s0 = inlined_call_operand.hbm [shape: bf16[8,1024], index: 0, kind: input, shape index: {}]
  %s1 = inlined_call_operand.hbm [shape: bf16[1024,512], index: 1, kind: input, shape index: {}]
  %s2 = inlined_call_operand.hbm [shape: f32[1,512], index: 2, kind: input, shape index: {}]
  %s3 = inlined_call_operand.hbm [shape: bf16[512,256], index: 3, kind: input, shape index: {}]
  %s4 = inlined_call_operand.vmem [shape: f32[1,256], index: 4, kind: input, shape index: {}]
  %s5 = inlined_call_operand.vmem [shape: f32[1,256], index: 5, kind: input, shape index: {}]
  %s6 = inlined_call_operand.<no memory space> [shape: f32[1,1], index: 6, kind: input, shape index: {}]
  %s7 = inlined_call_operand.vmem [shape: f32[8,1], index: 7, kind: output, shape index: {}]
  %s8 = sld [smem:[#allocation0]]
  $region54: #{tpu_custom_call.1} parent=0
    _
  %s10 = ssub.s32 1, %s8
  %s11 = scalar_select 0, %s10, %s8
  %12 = sst [smem:[#allocation2]] %s6
  $region1: #{tpu_custom_call.1} parent=0
    #allocation3 [shape = 'u8[16384]{0}', space=vmem, size = 0x4000, scoped, tag = 'input window, operand 0, single buffered']
    #allocation4 [shape = 's32[1]{0}', space=sflag, size = 0x4, scoped, tag = 'scoped memory for tpu_custom_call.1']
    #allocation5 [shape = 'u8[1048576]{0}', space=vmem, size = 0x100000, scoped, tag = 'input window, operand 1, single buffered']
    #allocation6 [shape = 's32[1]{0}', space=sflag, size = 0x4, scoped, tag = 'scoped memory for tpu_custom_call.1']
    #allocation7 [shape = 'u8[2048]{0}', space=vmem, size = 0x800, scoped, tag = 'input window, operand 2, single buffered']
    #allocation8 [shape = 'u8[262144]{0}', space=vmem, size = 0x40000, scoped, tag = 'input window, operand 3, single buffered']
    #allocation9 [shape = 's32[1]{0}', space=sflag, size = 0x4, scoped, tag = 'scoped memory for tpu_custom_call.1']
    %13 = vsyncpa [#allocation4], 0
    %14 = vsyncpa [#allocation6], 0
    %15 = vsyncpa [#allocation9], 0
    // Predicated region
    $region2: #{tpu_custom_call.1} parent=1 // pred_check
      _
    $region3: #{tpu_custom_call.1} parent=1 // pred_check_branch
      %17 = sbr.rel (0) target = $region5
    $region4: #{tpu_custom_call.1} parent=1 // pred_region
      %19 = vsyncadd [#allocation4], 0
      %s21 = sshll.u32 %s0, 4
      %s22 = int_to_ptr.hbm [resolvable:$true] %s21
      %s23 = sshll.u32 [#allocation3], 4
      %s24 = int_to_ptr.vmem [resolvable:$true] %s23
      %26 = dma.hbm_to_vmem [thread:$0]  %s22, 512, %s24, [#allocation4]
    $region5: #{tpu_custom_call.1} parent=1 // pred_fallthru
      _
    // Predicated region
    $region6: #{tpu_custom_call.1} parent=1 // pred_check
      _
    $region7: #{tpu_custom_call.1} parent=1 // pred_check_branch
      %28 = sbr.rel (0) target = $region9
    $region8: #{tpu_custom_call.1} parent=1 // pred_region
      %30 = vsyncadd [#allocation6], 0
      %s31 = sshll.u32 %s1, 4
      %s32 = int_to_ptr.hbm [resolvable:$true] %s31
      %s33 = sshll.u32 [#allocation5], 4
      %s34 = int_to_ptr.vmem [resolvable:$true] %s33
      %39 = dma.hbm_to_vmem [thread:$0]  %s32, 32768, %s34, [#allocation6], 256, 256, 16
    $region9: #{tpu_custom_call.1} parent=1 // pred_fallthru
      _
    // Predicated region
    $region10: #{tpu_custom_call.1} parent=1 // pred_check
      _
    $region11: #{tpu_custom_call.1} parent=1 // pred_check_branch
      %41 = sbr.rel (0) target = $region13
    $region12: #{tpu_custom_call.1} parent=1 // pred_region
      %43 = vsyncadd [#allocation6], 0
      %s45 = sshll.u32 %s2, 4
      %s46 = int_to_ptr.hbm [resolvable:$true] %s45
      %s47 = sshll.u32 [#allocation7], 4
      %s48 = int_to_ptr.vmem [resolvable:$true] %s47
      %50 = dma.hbm_to_vmem [thread:$0]  %s46, 64, %s48, [#allocation6]
    $region13: #{tpu_custom_call.1} parent=1 // pred_fallthru
      _
    // Predicated region
    $region14: #{tpu_custom_call.1} parent=1 // pred_check
      _
    $region15: #{tpu_custom_call.1} parent=1 // pred_check_branch
      %52 = sbr.rel (0) target = $region17
    $region16: #{tpu_custom_call.1} parent=1 // pred_region
      %54 = vsyncadd [#allocation9], 0
      %s55 = sshll.u32 %s3, 4
      %s56 = int_to_ptr.hbm [resolvable:$true] %s55
      %s57 = sshll.u32 [#allocation8], 4
      %s58 = int_to_ptr.vmem [resolvable:$true] %s57
      %63 = dma.hbm_to_vmem [thread:$0]  %s56, 8192, %s58, [#allocation9], 128, 128, 8
    $region17: #{tpu_custom_call.1} parent=1 // pred_fallthru
      _
    // Predicated region
    $region18: #{tpu_custom_call.1} parent=1 // pred_check
      _
    $region19: #{tpu_custom_call.1} parent=1 // pred_check_branch
      %65 = sbr.rel (0) target = $region21
    $region20: #{tpu_custom_call.1} parent=1 // pred_region
      _
    $region21: #{tpu_custom_call.1} parent=1 // pred_fallthru
      _
    // Predicated region
    $region22: #{tpu_custom_call.1} parent=1 // pred_check
      _
    $region23: #{tpu_custom_call.1} parent=1 // pred_check_branch
      %67 = sbr.rel (0) target = $region25
    $region24: #{tpu_custom_call.1} parent=1 // pred_region
      _
    $region25: #{tpu_custom_call.1} parent=1 // pred_fallthru
      _
    // Predicated region
    $region26: #{tpu_custom_call.1} parent=1 // pred_check
      _
    $region27: #{tpu_custom_call.1} parent=1 // pred_check_branch
      %69 = sbr.rel (0) target = $region29
    $region28: #{tpu_custom_call.1} parent=1 // pred_region
      _
    $region29: #{tpu_custom_call.1} parent=1 // pred_fallthru
      _
    // Predicated region
    $region30: #{tpu_custom_call.1} parent=1 // pred_check
      _
    $region31: #{tpu_custom_call.1} parent=1 // pred_check_branch
      %71 = sbr.rel (0) target = $region33
    $region32: #{tpu_custom_call.1} parent=1 // pred_region
      %73 = dma.done [#allocation4], 512
    $region33: #{tpu_custom_call.1} parent=1 // pred_fallthru
      _
    // Predicated region
    $region34: #{tpu_custom_call.1} parent=1 // pred_check
      _
    $region35: #{tpu_custom_call.1} parent=1 // pred_check_branch
      %75 = sbr.rel (0) target = $region37
    $region36: #{tpu_custom_call.1} parent=1 // pred_region
      %77 = dma.done [#allocation6], 32768
    $region37: #{tpu_custom_call.1} parent=1 // pred_fallthru
      _
    // Predicated region
    $region38: #{tpu_custom_call.1} parent=1 // pred_check
      _
    $region39: #{tpu_custom_call.1} parent=1 // pred_check_branch
      %79 = sbr.rel (0) target = $region41
    $region40: #{tpu_custom_call.1} parent=1 // pred_region
      %81 = dma.done [#allocation6], 64
    $region41: #{tpu_custom_call.1} parent=1 // pred_fallthru
      _
    // Predicated region
    $region42: #{tpu_custom_call.1} parent=1 // pred_check
      _
    $region43: #{tpu_custom_call.1} parent=1 // pred_check_branch
      %83 = sbr.rel (0) target = $region45
    $region44: #{tpu_custom_call.1} parent=1 // pred_region
      %85 = dma.done [#allocation9], 8192
    $region45: #{tpu_custom_call.1} parent=1 // pred_fallthru
      _
    %v86 = vld [vmem:[#allocation3] sm:$0xff]
    %v87 = vld [vmem:[#allocation3 + $0x8] sm:$0xff]
    %v88 = vld [vmem:[#allocation3 + $0x10] sm:$0xff]
    %v89 = vld [vmem:[#allocation3 + $0x18] sm:$0xff]
    %v90 = vld [vmem:[#allocation5] sm:$0xff]
    %v91 = vld [vmem:[#allocation5 + $0x8] sm:$0xff]
    %v92 = vld [vmem:[#allocation5 + $0x10] sm:$0xff]
    %v93 = vld [vmem:[#allocation5 + $0x18] sm:$0xff]
    %v94 = vld [vmem:[#allocation5 + $0x20] sm:$0xff]
    %v95 = vld [vmem:[#allocation5 + $0x28] sm:$0xff]
    %v96 = vld [vmem:[#allocation5 + $0x30] sm:$0xff]
    %v97 = vld [vmem:[#allocation5 + $0x38] sm:$0xff]
    %v98 = vld [vmem:[#allocation5 + $0x40] sm:$0xff]
    %v99 = vld [vmem:[#allocation5 + $0x48] sm:$0xff]
    %v100 = vld [vmem:[#allocation5 + $0x50] sm:$0xff]
    %v101 = vld [vmem:[#allocation5 + $0x58] sm:$0xff]
    %v102 = vld [vmem:[#allocation5 + $0x60] sm:$0xff]
    %v103 = vld [vmem:[#allocation5 + $0x68] sm:$0xff]
    %v104 = vld [vmem:[#allocation5 + $0x70] sm:$0xff]
    %v105 = vld [vmem:[#allocation5 + $0x78] sm:$0xff]
    %v106 = vld [vmem:[#allocation5 + $0x80] sm:$0xff]
    %v107 = vld [vmem:[#allocation5 + $0x88] sm:$0xff]
    %v108 = vld [vmem:[#allocation5 + $0x90] sm:$0xff]
    %v109 = vld [vmem:[#allocation5 + $0x98] sm:$0xff]
    %v110 = vld [vmem:[#allocation5 + $0xa0] sm:$0xff]
    %v111 = vld [vmem:[#allocation5 + $0xa8] sm:$0xff]
    %v112 = vld [vmem:[#allocation5 + $0xb0] sm:$0xff]
    %v113 = vld [vmem:[#allocation5 + $0xb8] sm:$0xff]
    %v114 = vld [vmem:[#allocation5 + $0xc0] sm:$0xff]
    %v115 = vld [vmem:[#allocation5 + $0xc8] sm:$0xff]
    %v116 = vld [vmem:[#allocation5 + $0xd0] sm:$0xff]
    %v117 = vld [vmem:[#allocation5 + $0xd8] sm:$0xff]
    %v118 = vld [vmem:[#allocation5 + $0xe0] sm:$0xff]
    %v119 = vld [vmem:[#allocation5 + $0xe8] sm:$0xff]
    %v120 = vld [vmem:[#allocation5 + $0xf0] sm:$0xff]
    %v121 = vld [vmem:[#allocation5 + $0xf8] sm:$0xff]
    %v122 = vld [vmem:[#allocation5 + $0x100] sm:$0xff]
    %v123 = vld [vmem:[#allocation5 + $0x108] sm:$0xff]
    %v124 = vld [vmem:[#allocation5 + $0x110] sm:$0xff]
    %v125 = vld [vmem:[#allocation5 + $0x118] sm:$0xff]
    %v126 = vld [vmem:[#allocation5 + $0x120] sm:$0xff]
    %v127 = vld [vmem:[#allocation5 + $0x128] sm:$0xff]
    %v128 = vld [vmem:[#allocation5 + $0x130] sm:$0xff]
    %v129 = vld [vmem:[#allocation5 + $0x138] sm:$0xff]
    %v130 = vld [vmem:[#allocation5 + $0x140] sm:$0xff]
    %v131 = vld [vmem:[#allocation5 + $0x148] sm:$0xff]
    %v132 = vld [vmem:[#allocation5 + $0x150] sm:$0xff]
    %v133 = vld [vmem:[#allocation5 + $0x158] sm:$0xff]
    %v134 = vld [vmem:[#allocation5 + $0x160] sm:$0xff]
    %v135 = vld [vmem:[#allocation5 + $0x168] sm:$0xff]
    %v136 = vld [vmem:[#allocation5 + $0x170] sm:$0xff]
    %v137 = vld [vmem:[#allocation5 + $0x178] sm:$0xff]
    %v138 = vld [vmem:[#allocation5 + $0x180] sm:$0xff]
    %v139 = vld [vmem:[#allocation5 + $0x188] sm:$0xff]
    %v140 = vld [vmem:[#allocation5 + $0x190] sm:$0xff]
    %v141 = vld [vmem:[#allocation5 + $0x198] sm:$0xff]
    %v142 = vld [vmem:[#allocation5 + $0x1a0] sm:$0xff]
    %v143 = vld [vmem:[#allocation5 + $0x1a8] sm:$0xff]
    %v144 = vld [vmem:[#allocation5 + $0x1b0] sm:$0xff]
    %v145 = vld [vmem:[#allocation5 + $0x1b8] sm:$0xff]
    %v146 = vld [vmem:[#allocation5 + $0x1c0] sm:$0xff]
    %v147 = vld [vmem:[#allocation5 + $0x1c8] sm:$0xff]
    %v148 = vld [vmem:[#allocation5 + $0x1d0] sm:$0xff]
    %v149 = vld [vmem:[#allocation5 + $0x1d8] sm:$0xff]
    %v150 = vld [vmem:[#allocation5 + $0x1e0] sm:$0xff]
    %v151 = vld [vmem:[#allocation5 + $0x1e8] sm:$0xff]
    %v152 = vld [vmem:[#allocation5 + $0x1f0] sm:$0xff]
    %v153 = vld [vmem:[#allocation5 + $0x1f8] sm:$0xff]
    %v154 = vld [vmem:[#allocation5 + $0x200] sm:$0xff]
    %v155 = vld [vmem:[#allocation5 + $0x208] sm:$0xff]
    %v156 = vld [vmem:[#allocation5 + $0x210] sm:$0xff]
    %v157 = vld [vmem:[#allocation5 + $0x218] sm:$0xff]
    %v158 = vld [vmem:[#allocation5 + $0x220] sm:$0xff]
    %v159 = vld [vmem:[#allocation5 + $0x228] sm:$0xff]
    %v160 = vld [vmem:[#allocation5 + $0x230] sm:$0xff]
    %v161 = vld [vmem:[#allocation5 + $0x238] sm:$0xff]
    %v162 = vld [vmem:[#allocation5 + $0x240] sm:$0xff]
    %v163 = vld [vmem:[#allocation5 + $0x248] sm:$0xff]
    %v164 = vld [vmem:[#allocation5 + $0x250] sm:$0xff]
    %v165 = vld [vmem:[#allocation5 + $0x258] sm:$0xff]
    %v166 = vld [vmem:[#allocation5 + $0x260] sm:$0xff]
    %v167 = vld [vmem:[#allocation5 + $0x268] sm:$0xff]
    %v168 = vld [vmem:[#allocation5 + $0x270] sm:$0xff]
    %v169 = vld [vmem:[#allocation5 + $0x278] sm:$0xff]
    %v170 = vld [vmem:[#allocation5 + $0x280] sm:$0xff]
    %v171 = vld [vmem:[#allocation5 + $0x288] sm:$0xff]
    %v172 = vld [vmem:[#allocation5 + $0x290] sm:$0xff]
    %v173 = vld [vmem:[#allocation5 + $0x298] sm:$0xff]
    %v174 = vld [vmem:[#allocation5 + $0x2a0] sm:$0xff]
    %v175 = vld [vmem:[#allocation5 + $0x2a8] sm:$0xff]
    %v176 = vld [vmem:[#allocation5 + $0x2b0] sm:$0xff]
    %v177 = vld [vmem:[#allocation5 + $0x2b8] sm:$0xff]
    %v178 = vld [vmem:[#allocation5 + $0x2c0] sm:$0xff]
    %v179 = vld [vmem:[#allocation5 + $0x2c8] sm:$0xff]
    %v180 = vld [vmem:[#allocation5 + $0x2d0] sm:$0xff]
    %v181 = vld [vmem:[#allocation5 + $0x2d8] sm:$0xff]
    %v182 = vld [vmem:[#allocation5 + $0x2e0] sm:$0xff]
    %v183 = vld [vmem:[#allocation5 + $0x2e8] sm:$0xff]
    %v184 = vld [vmem:[#allocation5 + $0x2f0] sm:$0xff]
    %v185 = vld [vmem:[#allocation5 + $0x2f8] sm:$0xff]
    %v186 = vld [vmem:[#allocation5 + $0x300] sm:$0xff]
    %v187 = vld [vmem:[#allocation5 + $0x308] sm:$0xff]
    %v188 = vld [vmem:[#allocation5 + $0x310] sm:$0xff]
    %v189 = vld [vmem:[#allocation5 + $0x318] sm:$0xff]
    %v190 = vld [vmem:[#allocation5 + $0x320] sm:$0xff]
    %v191 = vld [vmem:[#allocation5 + $0x328] sm:$0xff]
    %v192 = vld [vmem:[#allocation5 + $0x330] sm:$0xff]
    %v193 = vld [vmem:[#allocation5 + $0x338] sm:$0xff]
    %v194 = vld [vmem:[#allocation5 + $0x340] sm:$0xff]
    %v195 = vld [vmem:[#allocation5 + $0x348] sm:$0xff]
    %v196 = vld [vmem:[#allocation5 + $0x350] sm:$0xff]
    %v197 = vld [vmem:[#allocation5 + $0x358] sm:$0xff]
    %v198 = vld [vmem:[#allocation5 + $0x360] sm:$0xff]
    %v199 = vld [vmem:[#allocation5 + $0x368] sm:$0xff]
    %v200 = vld [vmem:[#allocation5 + $0x370] sm:$0xff]
    %v201 = vld [vmem:[#allocation5 + $0x378] sm:$0xff]
    %v202 = vld [vmem:[#allocation5 + $0x380] sm:$0xff]
    %v203 = vld [vmem:[#allocation5 + $0x388] sm:$0xff]
    %v204 = vld [vmem:[#allocation5 + $0x390] sm:$0xff]
    %v205 = vld [vmem:[#allocation5 + $0x398] sm:$0xff]
    %v206 = vld [vmem:[#allocation5 + $0x3a0] sm:$0xff]
    %v207 = vld [vmem:[#allocation5 + $0x3a8] sm:$0xff]
    %v208 = vld [vmem:[#allocation5 + $0x3b0] sm:$0xff]
    %v209 = vld [vmem:[#allocation5 + $0x3b8] sm:$0xff]
    %v210 = vld [vmem:[#allocation5 + $0x3c0] sm:$0xff]
    %v211 = vld [vmem:[#allocation5 + $0x3c8] sm:$0xff]
    %v212 = vld [vmem:[#allocation5 + $0x3d0] sm:$0xff]
    %v213 = vld [vmem:[#allocation5 + $0x3d8] sm:$0xff]
    %v214 = vld [vmem:[#allocation5 + $0x3e0] sm:$0xff]
    %v215 = vld [vmem:[#allocation5 + $0x3e8] sm:$0xff]
    %v216 = vld [vmem:[#allocation5 + $0x3f0] sm:$0xff]
    %v217 = vld [vmem:[#allocation5 + $0x3f8] sm:$0xff]
    %v218 = vld [vmem:[#allocation5 + $0x400] sm:$0xff]
    %v219 = vld [vmem:[#allocation5 + $0x408] sm:$0xff]
    %v220 = vld [vmem:[#allocation5 + $0x410] sm:$0xff]
    %v221 = vld [vmem:[#allocation5 + $0x418] sm:$0xff]
    %v222 = vld [vmem:[#allocation5 + $0x420] sm:$0xff]
    %v223 = vld [vmem:[#allocation5 + $0x428] sm:$0xff]
    %v224 = vld [vmem:[#allocation5 + $0x430] sm:$0xff]
    %v225 = vld [vmem:[#allocation5 + $0x438] sm:$0xff]
    %v226 = vld [vmem:[#allocation5 + $0x440] sm:$0xff]
    %v227 = vld [vmem:[#allocation5 + $0x448] sm:$0xff]
    %v228 = vld [vmem:[#allocation5 + $0x450] sm:$0xff]
    %v229 = vld [vmem:[#allocation5 + $0x458] sm:$0xff]
    %v230 = vld [vmem:[#allocation5 + $0x460] sm:$0xff]
    %v231 = vld [vmem:[#allocation5 + $0x468] sm:$0xff]
    %v232 = vld [vmem:[#allocation5 + $0x470] sm:$0xff]
    %v233 = vld [vmem:[#allocation5 + $0x478] sm:$0xff]
    %v234 = vld [vmem:[#allocation5 + $0x480] sm:$0xff]
    %v235 = vld [vmem:[#allocation5 + $0x488] sm:$0xff]
    %v236 = vld [vmem:[#allocation5 + $0x490] sm:$0xff]
    %v237 = vld [vmem:[#allocation5 + $0x498] sm:$0xff]
    %v238 = vld [vmem:[#allocation5 + $0x4a0] sm:$0xff]
    %v239 = vld [vmem:[#allocation5 + $0x4a8] sm:$0xff]
    %v240 = vld [vmem:[#allocation5 + $0x4b0] sm:$0xff]
    %v241 = vld [vmem:[#allocation5 + $0x4b8] sm:$0xff]
    %v242 = vld [vmem:[#allocation5 + $0x4c0] sm:$0xff]
    %v243 = vld [vmem:[#allocation5 + $0x4c8] sm:$0xff]
    %v244 = vld [vmem:[#allocation5 + $0x4d0] sm:$0xff]
    %v245 = vld [vmem:[#allocation5 + $0x4d8] sm:$0xff]
    %v246 = vld [vmem:[#allocation5 + $0x4e0] sm:$0xff]
    %v247 = vld [vmem:[#allocation5 + $0x4e8] sm:$0xff]
    %v248 = vld [vmem:[#allocation5 + $0x4f0] sm:$0xff]
    %v249 = vld [vmem:[#allocation5 + $0x4f8] sm:$0xff]
    %v250 = vld [vmem:[#allocation5 + $0x500] sm:$0xff]
    %v251 = vld [vmem:[#allocation5 + $0x508] sm:$0xff]
    %v252 = vld [vmem:[#allocation5 + $0x510] sm:$0xff]
    %v253 = vld [vmem:[#allocation5 + $0x518] sm:$0xff]
    %v254 = vld [vmem:[#allocation5 + $0x520] sm:$0xff]
    %v255 = vld [vmem:[#allocation5 + $0x528] sm:$0xff]
    %v256 = vld [vmem:[#allocation5 + $0x530] sm:$0xff]
    %v257 = vld [vmem:[#allocation5 + $0x538] sm:$0xff]
    %v258 = vld [vmem:[#allocation5 + $0x540] sm:$0xff]
    %v259 = vld [vmem:[#allocation5 + $0x548] sm:$0xff]
    %v260 = vld [vmem:[#allocation5 + $0x550] sm:$0xff]
    %v261 = vld [vmem:[#allocation5 + $0x558] sm:$0xff]
    %v262 = vld [vmem:[#allocation5 + $0x560] sm:$0xff]
    %v263 = vld [vmem:[#allocation5 + $0x568] sm:$0xff]
    %v264 = vld [vmem:[#allocation5 + $0x570] sm:$0xff]
    %v265 = vld [vmem:[#allocation5 + $0x578] sm:$0xff]
    %v266 = vld [vmem:[#allocation5 + $0x580] sm:$0xff]
    %v267 = vld [vmem:[#allocation5 + $0x588] sm:$0xff]
    %v268 = vld [vmem:[#allocation5 + $0x590] sm:$0xff]
    %v269 = vld [vmem:[#allocation5 + $0x598] sm:$0xff]
    %v270 = vld [vmem:[#allocation5 + $0x5a0] sm:$0xff]
    %v271 = vld [vmem:[#allocation5 + $0x5a8] sm:$0xff]
    %v272 = vld [vmem:[#allocation5 + $0x5b0] sm:$0xff]
    %v273 = vld [vmem:[#allocation5 + $0x5b8] sm:$0xff]
    %v274 = vld [vmem:[#allocation5 + $0x5c0] sm:$0xff]
    %v275 = vld [vmem:[#allocation5 + $0x5c8] sm:$0xff]
    %v276 = vld [vmem:[#allocation5 + $0x5d0] sm:$0xff]
    %v277 = vld [vmem:[#allocation5 + $0x5d8] sm:$0xff]
    %v278 = vld [vmem:[#allocation5 + $0x5e0] sm:$0xff]
    %v279 = vld [vmem:[#allocation5 + $0x5e8] sm:$0xff]
    %v280 = vld [vmem:[#allocation5 + $0x5f0] sm:$0xff]
    %v281 = vld [vmem:[#allocation5 + $0x5f8] sm:$0xff]
    %v282 = vld [vmem:[#allocation5 + $0x600] sm:$0xff]
    %v283 = vld [vmem:[#allocation5 + $0x608] sm:$0xff]
    %v284 = vld [vmem:[#allocation5 + $0x610] sm:$0xff]
    %v285 = vld [vmem:[#allocation5 + $0x618] sm:$0xff]
    %v286 = vld [vmem:[#allocation5 + $0x620] sm:$0xff]
    %v287 = vld [vmem:[#allocation5 + $0x628] sm:$0xff]
    %v288 = vld [vmem:[#allocation5 + $0x630] sm:$0xff]
    %v289 = vld [vmem:[#allocation5 + $0x638] sm:$0xff]
    %v290 = vld [vmem:[#allocation5 + $0x640] sm:$0xff]
    %v291 = vld [vmem:[#allocation5 + $0x648] sm:$0xff]
    %v292 = vld [vmem:[#allocation5 + $0x650] sm:$0xff]
    %v293 = vld [vmem:[#allocation5 + $0x658] sm:$0xff]
    %v294 = vld [vmem:[#allocation5 + $0x660] sm:$0xff]
    %v295 = vld [vmem:[#allocation5 + $0x668] sm:$0xff]
    %v296 = vld [vmem:[#allocation5 + $0x670] sm:$0xff]
    %v297 = vld [vmem:[#allocation5 + $0x678] sm:$0xff]
    %v298 = vld [vmem:[#allocation5 + $0x680] sm:$0xff]
    %v299 = vld [vmem:[#allocation5 + $0x688] sm:$0xff]
    %v300 = vld [vmem:[#allocation5 + $0x690] sm:$0xff]
    %v301 = vld [vmem:[#allocation5 + $0x698] sm:$0xff]
    %v302 = vld [vmem:[#allocation5 + $0x6a0] sm:$0xff]
    %v303 = vld [vmem:[#allocation5 + $0x6a8] sm:$0xff]
    %v304 = vld [vmem:[#allocation5 + $0x6b0] sm:$0xff]
    %v305 = vld [vmem:[#allocation5 + $0x6b8] sm:$0xff]
    %v306 = vld [vmem:[#allocation5 + $0x6c0] sm:$0xff]
    %v307 = vld [vmem:[#allocation5 + $0x6c8] sm:$0xff]
    %v308 = vld [vmem:[#allocation5 + $0x6d0] sm:$0xff]
    %v309 = vld [vmem:[#allocation5 + $0x6d8] sm:$0xff]
    %v310 = vld [vmem:[#allocation5 + $0x6e0] sm:$0xff]
    %v311 = vld [vmem:[#allocation5 + $0x6e8] sm:$0xff]
    %v312 = vld [vmem:[#allocation5 + $0x6f0] sm:$0xff]
    %v313 = vld [vmem:[#allocation5 + $0x6f8] sm:$0xff]
    %v314 = vld [vmem:[#allocation5 + $0x700] sm:$0xff]
    %v315 = vld [vmem:[#allocation5 + $0x708] sm:$0xff]
    %v316 = vld [vmem:[#allocation5 + $0x710] sm:$0xff]
    %v317 = vld [vmem:[#allocation5 + $0x718] sm:$0xff]
    %v318 = vld [vmem:[#allocation5 + $0x720] sm:$0xff]
    %v319 = vld [vmem:[#allocation5 + $0x728] sm:$0xff]
    %v320 = vld [vmem:[#allocation5 + $0x730] sm:$0xff]
    %v321 = vld [vmem:[#allocation5 + $0x738] sm:$0xff]
    %v322 = vld [vmem:[#allocation5 + $0x740] sm:$0xff]
    %v323 = vld [vmem:[#allocation5 + $0x748] sm:$0xff]
    %v324 = vld [vmem:[#allocation5 + $0x750] sm:$0xff]
    %v325 = vld [vmem:[#allocation5 + $0x758] sm:$0xff]
    %v326 = vld [vmem:[#allocation5 + $0x760] sm:$0xff]
    %v327 = vld [vmem:[#allocation5 + $0x768] sm:$0xff]
    %v328 = vld [vmem:[#allocation5 + $0x770] sm:$0xff]
    %v329 = vld [vmem:[#allocation5 + $0x778] sm:$0xff]
    %v330 = vld [vmem:[#allocation5 + $0x780] sm:$0xff]
    %v331 = vld [vmem:[#allocation5 + $0x788] sm:$0xff]
    %v332 = vld [vmem:[#allocation5 + $0x790] sm:$0xff]
    %v333 = vld [vmem:[#allocation5 + $0x798] sm:$0xff]
    %v334 = vld [vmem:[#allocation5 + $0x7a0] sm:$0xff]
    %v335 = vld [vmem:[#allocation5 + $0x7a8] sm:$0xff]
    %v336 = vld [vmem:[#allocation5 + $0x7b0] sm:$0xff]
    %v337 = vld [vmem:[#allocation5 + $0x7b8] sm:$0xff]
    %v338 = vld [vmem:[#allocation5 + $0x7c0] sm:$0xff]
    %v339 = vld [vmem:[#allocation5 + $0x7c8] sm:$0xff]
    %v340 = vld [vmem:[#allocation5 + $0x7d0] sm:$0xff]
    %v341 = vld [vmem:[#allocation5 + $0x7d8] sm:$0xff]
    %v342 = vld [vmem:[#allocation5 + $0x7e0] sm:$0xff]
    %v343 = vld [vmem:[#allocation5 + $0x7e8] sm:$0xff]
    %v344 = vld [vmem:[#allocation5 + $0x7f0] sm:$0xff]
    %v345 = vld [vmem:[#allocation5 + $0x7f8] sm:$0xff]
    %v346 = vld [vmem:[#allocation7] sm:$0xf]
    %v348 = vperm.slane %v346, 0
    %v349 = vperm.slane %v346, 1
    %v350 = vperm.slane %v346, 2
    %v351 = vperm.slane %v346, 3
    %v360 = vunpack.c.l.b16 %v86
    %v361 = vunpack.c.h.b16 %v86
    %v362 = vunpack.c.l.b16 %v87
    %v363 = vunpack.c.h.b16 %v87
    %v364 = vunpack.c.l.b16 %v88
    %v365 = vunpack.c.h.b16 %v88
    %v366 = vunpack.c.l.b16 %v89
    %v367 = vunpack.c.h.b16 %v89
    %v368 = vpack.c.b16 %v360, %v360
    %v369 = vpack.c.b16 %v361, %v361
    %v370 = vpack.c.b16 %v362, %v362
    %v371 = vpack.c.b16 %v363, %v363
    %v372 = vpack.c.b16 %v364, %v364
    %v373 = vpack.c.b16 %v365, %v365
    %v374 = vpack.c.b16 %v366, %v366
    %v375 = vpack.c.b16 %v367, %v367
    %v640 = vunpack.c.l.b16 %v90
    %v641 = vunpack.c.h.b16 %v90
    %v642 = vunpack.c.l.b16 %v91
    %v643 = vunpack.c.h.b16 %v91
    %v644 = vunpack.c.l.b16 %v92
    %v645 = vunpack.c.h.b16 %v92
    %v646 = vunpack.c.l.b16 %v93
    %v647 = vunpack.c.h.b16 %v93
    %v648 = vunpack.c.l.b16 %v94
    %v649 = vunpack.c.h.b16 %v94
    %v650 = vunpack.c.l.b16 %v95
    %v651 = vunpack.c.h.b16 %v95
    %v652 = vunpack.c.l.b16 %v96
    %v653 = vunpack.c.h.b16 %v96
    %v654 = vunpack.c.l.b16 %v97
    %v655 = vunpack.c.h.b16 %v97
    %v656 = vunpack.c.l.b16 %v98
    %v657 = vunpack.c.h.b16 %v98
    %v658 = vunpack.c.l.b16 %v99
    %v659 = vunpack.c.h.b16 %v99
    %v660 = vunpack.c.l.b16 %v100
    %v661 = vunpack.c.h.b16 %v100
    %v662 = vunpack.c.l.b16 %v101
    %v663 = vunpack.c.h.b16 %v101
    %v664 = vunpack.c.l.b16 %v102
    %v665 = vunpack.c.h.b16 %v102
    %v666 = vunpack.c.l.b16 %v103
    %v667 = vunpack.c.h.b16 %v103
    %v668 = vunpack.c.l.b16 %v104
    %v669 = vunpack.c.h.b16 %v104
    %v670 = vunpack.c.l.b16 %v105
    %v671 = vunpack.c.h.b16 %v105
    %v672 = vunpack.c.l.b16 %v106
    %v673 = vunpack.c.h.b16 %v106
    %v674 = vunpack.c.l.b16 %v107
    %v675 = vunpack.c.h.b16 %v107
    %v676 = vunpack.c.l.b16 %v108
    %v677 = vunpack.c.h.b16 %v108
    %v678 = vunpack.c.l.b16 %v109
    %v679 = vunpack.c.h.b16 %v109
    %v680 = vunpack.c.l.b16 %v110
    %v681 = vunpack.c.h.b16 %v110
    %v682 = vunpack.c.l.b16 %v111
    %v683 = vunpack.c.h.b16 %v111
    %v684 = vunpack.c.l.b16 %v112
    %v685 = vunpack.c.h.b16 %v112
    %v686 = vunpack.c.l.b16 %v113
    %v687 = vunpack.c.h.b16 %v113
    %v688 = vunpack.c.l.b16 %v114
    %v689 = vunpack.c.h.b16 %v114
    %v690 = vunpack.c.l.b16 %v115
    %v691 = vunpack.c.h.b16 %v115
    %v692 = vunpack.c.l.b16 %v116
    %v693 = vunpack.c.h.b16 %v116
    %v694 = vunpack.c.l.b16 %v117
    %v695 = vunpack.c.h.b16 %v117
    %v696 = vunpack.c.l.b16 %v118
    %v697 = vunpack.c.h.b16 %v118
    %v698 = vunpack.c.l.b16 %v119
    %v699 = vunpack.c.h.b16 %v119
    %v700 = vunpack.c.l.b16 %v120
    %v701 = vunpack.c.h.b16 %v120
    %v702 = vunpack.c.l.b16 %v121
    %v703 = vunpack.c.h.b16 %v121
    %v704 = vunpack.c.l.b16 %v122
    %v705 = vunpack.c.h.b16 %v122
    %v706 = vunpack.c.l.b16 %v123
    %v707 = vunpack.c.h.b16 %v123
    %v708 = vunpack.c.l.b16 %v124
    %v709 = vunpack.c.h.b16 %v124
    %v710 = vunpack.c.l.b16 %v125
    %v711 = vunpack.c.h.b16 %v125
    %v712 = vunpack.c.l.b16 %v126
    %v713 = vunpack.c.h.b16 %v126
    %v714 = vunpack.c.l.b16 %v127
    %v715 = vunpack.c.h.b16 %v127
    %v716 = vunpack.c.l.b16 %v128
    %v717 = vunpack.c.h.b16 %v128
    %v718 = vunpack.c.l.b16 %v129
    %v719 = vunpack.c.h.b16 %v129
    %v720 = vunpack.c.l.b16 %v130
    %v721 = vunpack.c.h.b16 %v130
    %v722 = vunpack.c.l.b16 %v131
    %v723 = vunpack.c.h.b16 %v131
    %v724 = vunpack.c.l.b16 %v132
    %v725 = vunpack.c.h.b16 %v132
    %v726 = vunpack.c.l.b16 %v133
    %v727 = vunpack.c.h.b16 %v133
    %v728 = vunpack.c.l.b16 %v134
    %v729 = vunpack.c.h.b16 %v134
    %v730 = vunpack.c.l.b16 %v135
    %v731 = vunpack.c.h.b16 %v135
    %v732 = vunpack.c.l.b16 %v136
    %v733 = vunpack.c.h.b16 %v136
    %v734 = vunpack.c.l.b16 %v137
    %v735 = vunpack.c.h.b16 %v137
    %v736 = vunpack.c.l.b16 %v138
    %v737 = vunpack.c.h.b16 %v138
    %v738 = vunpack.c.l.b16 %v139
    %v739 = vunpack.c.h.b16 %v139
    %v740 = vunpack.c.l.b16 %v140
    %v741 = vunpack.c.h.b16 %v140
    %v742 = vunpack.c.l.b16 %v141
    %v743 = vunpack.c.h.b16 %v141
    %v744 = vunpack.c.l.b16 %v142
    %v745 = vunpack.c.h.b16 %v142
    %v746 = vunpack.c.l.b16 %v143
    %v747 = vunpack.c.h.b16 %v143
    %v748 = vunpack.c.l.b16 %v144
    %v749 = vunpack.c.h.b16 %v144
    %v750 = vunpack.c.l.b16 %v145
    %v751 = vunpack.c.h.b16 %v145
    %v752 = vunpack.c.l.b16 %v146
    %v753 = vunpack.c.h.b16 %v146
    %v754 = vunpack.c.l.b16 %v147
    %v755 = vunpack.c.h.b16 %v147
    %v756 = vunpack.c.l.b16 %v148
    %v757 = vunpack.c.h.b16 %v148
    %v758 = vunpack.c.l.b16 %v149
    %v759 = vunpack.c.h.b16 %v149
    %v760 = vunpack.c.l.b16 %v150
    %v761 = vunpack.c.h.b16 %v150
    %v762 = vunpack.c.l.b16 %v151
    %v763 = vunpack.c.h.b16 %v151
    %v764 = vunpack.c.l.b16 %v152
    %v765 = vunpack.c.h.b16 %v152
    %v766 = vunpack.c.l.b16 %v153
    %v767 = vunpack.c.h.b16 %v153
    %v768 = vunpack.c.l.b16 %v154
    %v769 = vunpack.c.h.b16 %v154
    %v770 = vunpack.c.l.b16 %v155
    %v771 = vunpack.c.h.b16 %v155
    %v772 = vunpack.c.l.b16 %v156
    %v773 = vunpack.c.h.b16 %v156
    %v774 = vunpack.c.l.b16 %v157
    %v775 = vunpack.c.h.b16 %v157
    %v776 = vunpack.c.l.b16 %v158
    %v777 = vunpack.c.h.b16 %v158
    %v778 = vunpack.c.l.b16 %v159
    %v779 = vunpack.c.h.b16 %v159
    %v780 = vunpack.c.l.b16 %v160
    %v781 = vunpack.c.h.b16 %v160
    %v782 = vunpack.c.l.b16 %v161
    %v783 = vunpack.c.h.b16 %v161
    %v784 = vunpack.c.l.b16 %v162
    %v785 = vunpack.c.h.b16 %v162
    %v786 = vunpack.c.l.b16 %v163
    %v787 = vunpack.c.h.b16 %v163
    %v788 = vunpack.c.l.b16 %v164
    %v789 = vunpack.c.h.b16 %v164
    %v790 = vunpack.c.l.b16 %v165
    %v791 = vunpack.c.h.b16 %v165
    %v792 = vunpack.c.l.b16 %v166
    %v793 = vunpack.c.h.b16 %v166
    %v794 = vunpack.c.l.b16 %v167
    %v795 = vunpack.c.h.b16 %v167
    %v796 = vunpack.c.l.b16 %v168
    %v797 = vunpack.c.h.b16 %v168
    %v798 = vunpack.c.l.b16 %v169
    %v799 = vunpack.c.h.b16 %v169
    %v800 = vunpack.c.l.b16 %v170
    %v801 = vunpack.c.h.b16 %v170
    %v802 = vunpack.c.l.b16 %v171
    %v803 = vunpack.c.h.b16 %v171
    %v804 = vunpack.c.l.b16 %v172
    %v805 = vunpack.c.h.b16 %v172
    %v806 = vunpack.c.l.b16 %v173
    %v807 = vunpack.c.h.b16 %v173
    %v808 = vunpack.c.l.b16 %v174
    %v809 = vunpack.c.h.b16 %v174
    %v810 = vunpack.c.l.b16 %v175
    %v811 = vunpack.c.h.b16 %v175
    %v812 = vunpack.c.l.b16 %v176
    %v813 = vunpack.c.h.b16 %v176
    %v814 = vunpack.c.l.b16 %v177
    %v815 = vunpack.c.h.b16 %v177
    %v816 = vunpack.c.l.b16 %v178
    %v817 = vunpack.c.h.b16 %v178
    %v818 = vunpack.c.l.b16 %v179
    %v819 = vunpack.c.h.b16 %v179
    %v820 = vunpack.c.l.b16 %v180
    %v821 = vunpack.c.h.b16 %v180
    %v822 = vunpack.c.l.b16 %v181
    %v823 = vunpack.c.h.b16 %v181
    %v824 = vunpack.c.l.b16 %v182
    %v825 = vunpack.c.h.b16 %v182
    %v826 = vunpack.c.l.b16 %v183
    %v827 = vunpack.c.h.b16 %v183
    %v828 = vunpack.c.l.b16 %v184
    %v829 = vunpack.c.h.b16 %v184
    %v830 = vunpack.c.l.b16 %v185
    %v831 = vunpack.c.h.b16 %v185
    %v832 = vunpack.c.l.b16 %v186
    %v833 = vunpack.c.h.b16 %v186
    %v834 = vunpack.c.l.b16 %v187
    %v835 = vunpack.c.h.b16 %v187
    %v836 = vunpack.c.l.b16 %v188
    %v837 = vunpack.c.h.b16 %v188
    %v838 = vunpack.c.l.b16 %v189
    %v839 = vunpack.c.h.b16 %v189
    %v840 = vunpack.c.l.b16 %v190
    %v841 = vunpack.c.h.b16 %v190
    %v842 = vunpack.c.l.b16 %v191
    %v843 = vunpack.c.h.b16 %v191
    %v844 = vunpack.c.l.b16 %v192
    %v845 = vunpack.c.h.b16 %v192
    %v846 = vunpack.c.l.b16 %v193
    %v847 = vunpack.c.h.b16 %v193
    %v848 = vunpack.c.l.b16 %v194
    %v849 = vunpack.c.h.b16 %v194
    %v850 = vunpack.c.l.b16 %v195
    %v851 = vunpack.c.h.b16 %v195
    %v852 = vunpack.c.l.b16 %v196
    %v853 = vunpack.c.h.b16 %v196
    %v854 = vunpack.c.l.b16 %v197
    %v855 = vunpack.c.h.b16 %v197
    %v856 = vunpack.c.l.b16 %v198
    %v857 = vunpack.c.h.b16 %v198
    %v858 = vunpack.c.l.b16 %v199
    %v859 = vunpack.c.h.b16 %v199
    %v860 = vunpack.c.l.b16 %v200
    %v861 = vunpack.c.h.b16 %v200
    %v862 = vunpack.c.l.b16 %v201
    %v863 = vunpack.c.h.b16 %v201
    %v864 = vunpack.c.l.b16 %v202
    %v865 = vunpack.c.h.b16 %v202
    %v866 = vunpack.c.l.b16 %v203
    %v867 = vunpack.c.h.b16 %v203
    %v868 = vunpack.c.l.b16 %v204
    %v869 = vunpack.c.h.b16 %v204
    %v870 = vunpack.c.l.b16 %v205
    %v871 = vunpack.c.h.b16 %v205
    %v872 = vunpack.c.l.b16 %v206
    %v873 = vunpack.c.h.b16 %v206
    %v874 = vunpack.c.l.b16 %v207
    %v875 = vunpack.c.h.b16 %v207
    %v876 = vunpack.c.l.b16 %v208
    %v877 = vunpack.c.h.b16 %v208
    %v878 = vunpack.c.l.b16 %v209
    %v879 = vunpack.c.h.b16 %v209
    %v880 = vunpack.c.l.b16 %v210
    %v881 = vunpack.c.h.b16 %v210
    %v882 = vunpack.c.l.b16 %v211
    %v883 = vunpack.c.h.b16 %v211
    %v884 = vunpack.c.l.b16 %v212
    %v885 = vunpack.c.h.b16 %v212
    %v886 = vunpack.c.l.b16 %v213
    %v887 = vunpack.c.h.b16 %v213
    %v888 = vunpack.c.l.b16 %v214
    %v889 = vunpack.c.h.b16 %v214
    %v890 = vunpack.c.l.b16 %v215
    %v891 = vunpack.c.h.b16 %v215
    %v892 = vunpack.c.l.b16 %v216
    %v893 = vunpack.c.h.b16 %v216
    %v894 = vunpack.c.l.b16 %v217
    %v895 = vunpack.c.h.b16 %v217
    %v896 = vunpack.c.l.b16 %v218
    %v897 = vunpack.c.h.b16 %v218
    %v898 = vunpack.c.l.b16 %v219
    %v899 = vunpack.c.h.b16 %v219
    %v900 = vunpack.c.l.b16 %v220
    %v901 = vunpack.c.h.b16 %v220
    %v902 = vunpack.c.l.b16 %v221
    %v903 = vunpack.c.h.b16 %v221
    %v904 = vunpack.c.l.b16 %v222
    %v905 = vunpack.c.h.b16 %v222
    %v906 = vunpack.c.l.b16 %v223
    %v907 = vunpack.c.h.b16 %v223
    %v908 = vunpack.c.l.b16 %v224
    %v909 = vunpack.c.h.b16 %v224
    %v910 = vunpack.c.l.b16 %v225
    %v911 = vunpack.c.h.b16 %v225
    %v912 = vunpack.c.l.b16 %v226
    %v913 = vunpack.c.h.b16 %v226
    %v914 = vunpack.c.l.b16 %v227
    %v915 = vunpack.c.h.b16 %v227
    %v916 = vunpack.c.l.b16 %v228
    %v917 = vunpack.c.h.b16 %v228
    %v918 = vunpack.c.l.b16 %v229
    %v919 = vunpack.c.h.b16 %v229
    %v920 = vunpack.c.l.b16 %v230
    %v921 = vunpack.c.h.b16 %v230
    %v922 = vunpack.c.l.b16 %v231
    %v923 = vunpack.c.h.b16 %v231
    %v924 = vunpack.c.l.b16 %v232
    %v925 = vunpack.c.h.b16 %v232
    %v926 = vunpack.c.l.b16 %v233
    %v927 = vunpack.c.h.b16 %v233
    %v928 = vunpack.c.l.b16 %v234
    %v929 = vunpack.c.h.b16 %v234
    %v930 = vunpack.c.l.b16 %v235
    %v931 = vunpack.c.h.b16 %v235
    %v932 = vunpack.c.l.b16 %v236
    %v933 = vunpack.c.h.b16 %v236
    %v934 = vunpack.c.l.b16 %v237
    %v935 = vunpack.c.h.b16 %v237
    %v936 = vunpack.c.l.b16 %v238
    %v937 = vunpack.c.h.b16 %v238
    %v938 = vunpack.c.l.b16 %v239
    %v939 = vunpack.c.h.b16 %v239
    %v940 = vunpack.c.l.b16 %v240
    %v941 = vunpack.c.h.b16 %v240
    %v942 = vunpack.c.l.b16 %v241
    %v943 = vunpack.c.h.b16 %v241
    %v944 = vunpack.c.l.b16 %v242
    %v945 = vunpack.c.h.b16 %v242
    %v946 = vunpack.c.l.b16 %v243
    %v947 = vunpack.c.h.b16 %v243
    %v948 = vunpack.c.l.b16 %v244
    %v949 = vunpack.c.h.b16 %v244
    %v950 = vunpack.c.l.b16 %v245
    %v951 = vunpack.c.h.b16 %v245
    %v952 = vunpack.c.l.b16 %v246
    %v953 = vunpack.c.h.b16 %v246
    %v954 = vunpack.c.l.b16 %v247
    %v955 = vunpack.c.h.b16 %v247
    %v956 = vunpack.c.l.b16 %v248
    %v957 = vunpack.c.h.b16 %v248
    %v958 = vunpack.c.l.b16 %v249
    %v959 = vunpack.c.h.b16 %v249
    %v960 = vunpack.c.l.b16 %v250
    %v961 = vunpack.c.h.b16 %v250
    %v962 = vunpack.c.l.b16 %v251
    %v963 = vunpack.c.h.b16 %v251
    %v964 = vunpack.c.l.b16 %v252
    %v965 = vunpack.c.h.b16 %v252
    %v966 = vunpack.c.l.b16 %v253
    %v967 = vunpack.c.h.b16 %v253
    %v968 = vunpack.c.l.b16 %v254
    %v969 = vunpack.c.h.b16 %v254
    %v970 = vunpack.c.l.b16 %v255
    %v971 = vunpack.c.h.b16 %v255
    %v972 = vunpack.c.l.b16 %v256
    %v973 = vunpack.c.h.b16 %v256
    %v974 = vunpack.c.l.b16 %v257
    %v975 = vunpack.c.h.b16 %v257
    %v976 = vunpack.c.l.b16 %v258
    %v977 = vunpack.c.h.b16 %v258
    %v978 = vunpack.c.l.b16 %v259
    %v979 = vunpack.c.h.b16 %v259
    %v980 = vunpack.c.l.b16 %v260
    %v981 = vunpack.c.h.b16 %v260
    %v982 = vunpack.c.l.b16 %v261
    %v983 = vunpack.c.h.b16 %v261
    %v984 = vunpack.c.l.b16 %v262
    %v985 = vunpack.c.h.b16 %v262
    %v986 = vunpack.c.l.b16 %v263
    %v987 = vunpack.c.h.b16 %v263
    %v988 = vunpack.c.l.b16 %v264
    %v989 = vunpack.c.h.b16 %v264
    %v990 = vunpack.c.l.b16 %v265
    %v991 = vunpack.c.h.b16 %v265
    %v992 = vunpack.c.l.b16 %v266
    %v993 = vunpack.c.h.b16 %v266
    %v994 = vunpack.c.l.b16 %v267
    %v995 = vunpack.c.h.b16 %v267
    %v996 = vunpack.c.l.b16 %v268
    %v997 = vunpack.c.h.b16 %v268
    %v998 = vunpack.c.l.b16 %v269
    %v999 = vunpack.c.h.b16 %v269
    %v1000 = vunpack.c.l.b16 %v270
    %v1001 = vunpack.c.h.b16 %v270
    %v1002 = vunpack.c.l.b16 %v271
    %v1003 = vunpack.c.h.b16 %v271
    %v1004 = vunpack.c.l.b16 %v272
    %v1005 = vunpack.c.h.b16 %v272
    %v1006 = vunpack.c.l.b16 %v273
    %v1007 = vunpack.c.h.b16 %v273
    %v1008 = vunpack.c.l.b16 %v274
    %v1009 = vunpack.c.h.b16 %v274
    %v1010 = vunpack.c.l.b16 %v275
    %v1011 = vunpack.c.h.b16 %v275
    %v1012 = vunpack.c.l.b16 %v276
    %v1013 = vunpack.c.h.b16 %v276
    %v1014 = vunpack.c.l.b16 %v277
    %v1015 = vunpack.c.h.b16 %v277
    %v1016 = vunpack.c.l.b16 %v278
    %v1017 = vunpack.c.h.b16 %v278
    %v1018 = vunpack.c.l.b16 %v279
    %v1019 = vunpack.c.h.b16 %v279
    %v1020 = vunpack.c.l.b16 %v280
    %v1021 = vunpack.c.h.b16 %v280
    %v1022 = vunpack.c.l.b16 %v281
    %v1023 = vunpack.c.h.b16 %v281
    %v1024 = vunpack.c.l.b16 %v282
    %v1025 = vunpack.c.h.b16 %v282
    %v1026 = vunpack.c.l.b16 %v283
    %v1027 = vunpack.c.h.b16 %v283
    %v1028 = vunpack.c.l.b16 %v284
    %v1029 = vunpack.c.h.b16 %v284
    %v1030 = vunpack.c.l.b16 %v285
    %v1031 = vunpack.c.h.b16 %v285
    %v1032 = vunpack.c.l.b16 %v286
    %v1033 = vunpack.c.h.b16 %v286
    %v1034 = vunpack.c.l.b16 %v287
    %v1035 = vunpack.c.h.b16 %v287
    %v1036 = vunpack.c.l.b16 %v288
    %v1037 = vunpack.c.h.b16 %v288
    %v1038 = vunpack.c.l.b16 %v289
    %v1039 = vunpack.c.h.b16 %v289
    %v1040 = vunpack.c.l.b16 %v290
    %v1041 = vunpack.c.h.b16 %v290
    %v1042 = vunpack.c.l.b16 %v291
    %v1043 = vunpack.c.h.b16 %v291
    %v1044 = vunpack.c.l.b16 %v292
    %v1045 = vunpack.c.h.b16 %v292
    %v1046 = vunpack.c.l.b16 %v293
    %v1047 = vunpack.c.h.b16 %v293
    %v1048 = vunpack.c.l.b16 %v294
    %v1049 = vunpack.c.h.b16 %v294
    %v1050 = vunpack.c.l.b16 %v295
    %v1051 = vunpack.c.h.b16 %v295
    %v1052 = vunpack.c.l.b16 %v296
    %v1053 = vunpack.c.h.b16 %v296
    %v1054 = vunpack.c.l.b16 %v297
    %v1055 = vunpack.c.h.b16 %v297
    %v1056 = vunpack.c.l.b16 %v298
    %v1057 = vunpack.c.h.b16 %v298
    %v1058 = vunpack.c.l.b16 %v299
    %v1059 = vunpack.c.h.b16 %v299
    %v1060 = vunpack.c.l.b16 %v300
    %v1061 = vunpack.c.h.b16 %v300
    %v1062 = vunpack.c.l.b16 %v301
    %v1063 = vunpack.c.h.b16 %v301
    %v1064 = vunpack.c.l.b16 %v302
    %v1065 = vunpack.c.h.b16 %v302
    %v1066 = vunpack.c.l.b16 %v303
    %v1067 = vunpack.c.h.b16 %v303
    %v1068 = vunpack.c.l.b16 %v304
    %v1069 = vunpack.c.h.b16 %v304
    %v1070 = vunpack.c.l.b16 %v305
    %v1071 = vunpack.c.h.b16 %v305
    %v1072 = vunpack.c.l.b16 %v306
    %v1073 = vunpack.c.h.b16 %v306
    %v1074 = vunpack.c.l.b16 %v307
    %v1075 = vunpack.c.h.b16 %v307
    %v1076 = vunpack.c.l.b16 %v308
    %v1077 = vunpack.c.h.b16 %v308
    %v1078 = vunpack.c.l.b16 %v309
    %v1079 = vunpack.c.h.b16 %v309
    %v1080 = vunpack.c.l.b16 %v310
    %v1081 = vunpack.c.h.b16 %v310
    %v1082 = vunpack.c.l.b16 %v311
    %v1083 = vunpack.c.h.b16 %v311
    %v1084 = vunpack.c.l.b16 %v312
    %v1085 = vunpack.c.h.b16 %v312
    %v1086 = vunpack.c.l.b16 %v313
    %v1087 = vunpack.c.h.b16 %v313
    %v1088 = vunpack.c.l.b16 %v314
    %v1089 = vunpack.c.h.b16 %v314
    %v1090 = vunpack.c.l.b16 %v315
    %v1091 = vunpack.c.h.b16 %v315
    %v1092 = vunpack.c.l.b16 %v316
    %v1093 = vunpack.c.h.b16 %v316
    %v1094 = vunpack.c.l.b16 %v317
    %v1095 = vunpack.c.h.b16 %v317
    %v1096 = vunpack.c.l.b16 %v318
    %v1097 = vunpack.c.h.b16 %v318
    %v1098 = vunpack.c.l.b16 %v319
    %v1099 = vunpack.c.h.b16 %v319
    %v1100 = vunpack.c.l.b16 %v320
    %v1101 = vunpack.c.h.b16 %v320
    %v1102 = vunpack.c.l.b16 %v321
    %v1103 = vunpack.c.h.b16 %v321
    %v1104 = vunpack.c.l.b16 %v322
    %v1105 = vunpack.c.h.b16 %v322
    %v1106 = vunpack.c.l.b16 %v323
    %v1107 = vunpack.c.h.b16 %v323
    %v1108 = vunpack.c.l.b16 %v324
    %v1109 = vunpack.c.h.b16 %v324
    %v1110 = vunpack.c.l.b16 %v325
    %v1111 = vunpack.c.h.b16 %v325
    %v1112 = vunpack.c.l.b16 %v326
    %v1113 = vunpack.c.h.b16 %v326
    %v1114 = vunpack.c.l.b16 %v327
    %v1115 = vunpack.c.h.b16 %v327
    %v1116 = vunpack.c.l.b16 %v328
    %v1117 = vunpack.c.h.b16 %v328
    %v1118 = vunpack.c.l.b16 %v329
    %v1119 = vunpack.c.h.b16 %v329
    %v1120 = vunpack.c.l.b16 %v330
    %v1121 = vunpack.c.h.b16 %v330
    %v1122 = vunpack.c.l.b16 %v331
    %v1123 = vunpack.c.h.b16 %v331
    %v1124 = vunpack.c.l.b16 %v332
    %v1125 = vunpack.c.h.b16 %v332
    %v1126 = vunpack.c.l.b16 %v333
    %v1127 = vunpack.c.h.b16 %v333
    %v1128 = vunpack.c.l.b16 %v334
    %v1129 = vunpack.c.h.b16 %v334
    %v1130 = vunpack.c.l.b16 %v335
    %v1131 = vunpack.c.h.b16 %v335
    %v1132 = vunpack.c.l.b16 %v336
    %v1133 = vunpack.c.h.b16 %v336
    %v1134 = vunpack.c.l.b16 %v337
    %v1135 = vunpack.c.h.b16 %v337
    %v1136 = vunpack.c.l.b16 %v338
    %v1137 = vunpack.c.h.b16 %v338
    %v1138 = vunpack.c.l.b16 %v339
    %v1139 = vunpack.c.h.b16 %v339
    %v1140 = vunpack.c.l.b16 %v340
    %v1141 = vunpack.c.h.b16 %v340
    %v1142 = vunpack.c.l.b16 %v341
    %v1143 = vunpack.c.h.b16 %v341
    %v1144 = vunpack.c.l.b16 %v342
    %v1145 = vunpack.c.h.b16 %v342
    %v1146 = vunpack.c.l.b16 %v343
    %v1147 = vunpack.c.h.b16 %v343
    %v1148 = vunpack.c.l.b16 %v344
    %v1149 = vunpack.c.h.b16 %v344
    %v1150 = vunpack.c.l.b16 %v345
    %v1151 = vunpack.c.h.b16 %v345
    %v1152 = vpack.c.b16 %v644, %v640
    %v1153 = vpack.c.b16 %v645, %v641
    %v1154 = vpack.c.b16 %v646, %v642
    %v1155 = vpack.c.b16 %v647, %v643
    %v1156 = vpack.c.b16 %v652, %v648
    %v1157 = vpack.c.b16 %v653, %v649
    %v1158 = vpack.c.b16 %v654, %v650
    %v1159 = vpack.c.b16 %v655, %v651
    %v1160 = vpack.c.b16 %v660, %v656
    %v1161 = vpack.c.b16 %v661, %v657
    %v1162 = vpack.c.b16 %v662, %v658
    %v1163 = vpack.c.b16 %v663, %v659
    %v1164 = vpack.c.b16 %v668, %v664
    %v1165 = vpack.c.b16 %v669, %v665
    %v1166 = vpack.c.b16 %v670, %v666
    %v1167 = vpack.c.b16 %v671, %v667
    %v1168 = vpack.c.b16 %v676, %v672
    %v1169 = vpack.c.b16 %v677, %v673
    %v1170 = vpack.c.b16 %v678, %v674
    %v1171 = vpack.c.b16 %v679, %v675
    %v1172 = vpack.c.b16 %v684, %v680
    %v1173 = vpack.c.b16 %v685, %v681
    %v1174 = vpack.c.b16 %v686, %v682
    %v1175 = vpack.c.b16 %v687, %v683
    %v1176 = vpack.c.b16 %v692, %v688
    %v1177 = vpack.c.b16 %v693, %v689
    %v1178 = vpack.c.b16 %v694, %v690
    %v1179 = vpack.c.b16 %v695, %v691
    %v1180 = vpack.c.b16 %v700, %v696
    %v1181 = vpack.c.b16 %v701, %v697
    %v1182 = vpack.c.b16 %v702, %v698
    %v1183 = vpack.c.b16 %v703, %v699
    %v1184 = vpack.c.b16 %v708, %v704
    %v1185 = vpack.c.b16 %v709, %v705
    %v1186 = vpack.c.b16 %v710, %v706
    %v1187 = vpack.c.b16 %v711, %v707
    %v1188 = vpack.c.b16 %v716, %v712
    %v1189 = vpack.c.b16 %v717, %v713
    %v1190 = vpack.c.b16 %v718, %v714
    %v1191 = vpack.c.b16 %v719, %v715
    %v1192 = vpack.c.b16 %v724, %v720
    %v1193 = vpack.c.b16 %v725, %v721
    %v1194 = vpack.c.b16 %v726, %v722
    %v1195 = vpack.c.b16 %v727, %v723
    %v1196 = vpack.c.b16 %v732, %v728
    %v1197 = vpack.c.b16 %v733, %v729
    %v1198 = vpack.c.b16 %v734, %v730
    %v1199 = vpack.c.b16 %v735, %v731
    %v1200 = vpack.c.b16 %v740, %v736
    %v1201 = vpack.c.b16 %v741, %v737
    %v1202 = vpack.c.b16 %v742, %v738
    %v1203 = vpack.c.b16 %v743, %v739
    %v1204 = vpack.c.b16 %v748, %v744
    %v1205 = vpack.c.b16 %v749, %v745
    %v1206 = vpack.c.b16 %v750, %v746
    %v1207 = vpack.c.b16 %v751, %v747
    %v1208 = vpack.c.b16 %v756, %v752
    %v1209 = vpack.c.b16 %v757, %v753
    %v1210 = vpack.c.b16 %v758, %v754
    %v1211 = vpack.c.b16 %v759, %v755
    %v1212 = vpack.c.b16 %v764, %v760
    %v1213 = vpack.c.b16 %v765, %v761
    %v1214 = vpack.c.b16 %v766, %v762
    %v1215 = vpack.c.b16 %v767, %v763
    %v1216 = vpack.c.b16 %v772, %v768
    %v1217 = vpack.c.b16 %v773, %v769
    %v1218 = vpack.c.b16 %v774, %v770
    %v1219 = vpack.c.b16 %v775, %v771
    %v1220 = vpack.c.b16 %v780, %v776
    %v1221 = vpack.c.b16 %v781, %v777
    %v1222 = vpack.c.b16 %v782, %v778
    %v1223 = vpack.c.b16 %v783, %v779
    %v1224 = vpack.c.b16 %v788, %v784
    %v1225 = vpack.c.b16 %v789, %v785
    %v1226 = vpack.c.b16 %v790, %v786
    %v1227 = vpack.c.b16 %v791, %v787
    %v1228 = vpack.c.b16 %v796, %v792
    %v1229 = vpack.c.b16 %v797, %v793
    %v1230 = vpack.c.b16 %v798, %v794
    %v1231 = vpack.c.b16 %v799, %v795
    %v1232 = vpack.c.b16 %v804, %v800
    %v1233 = vpack.c.b16 %v805, %v801
    %v1234 = vpack.c.b16 %v806, %v802
    %v1235 = vpack.c.b16 %v807, %v803
    %v1236 = vpack.c.b16 %v812, %v808
    %v1237 = vpack.c.b16 %v813, %v809
    %v1238 = vpack.c.b16 %v814, %v810
    %v1239 = vpack.c.b16 %v815, %v811
    %v1240 = vpack.c.b16 %v820, %v816
    %v1241 = vpack.c.b16 %v821, %v817
    %v1242 = vpack.c.b16 %v822, %v818
    %v1243 = vpack.c.b16 %v823, %v819
    %v1244 = vpack.c.b16 %v828, %v824
    %v1245 = vpack.c.b16 %v829, %v825
    %v1246 = vpack.c.b16 %v830, %v826
    %v1247 = vpack.c.b16 %v831, %v827
    %v1248 = vpack.c.b16 %v836, %v832
    %v1249 = vpack.c.b16 %v837, %v833
    %v1250 = vpack.c.b16 %v838, %v834
    %v1251 = vpack.c.b16 %v839, %v835
    %v1252 = vpack.c.b16 %v844, %v840
    %v1253 = vpack.c.b16 %v845, %v841
    %v1254 = vpack.c.b16 %v846, %v842
    %v1255 = vpack.c.b16 %v847, %v843
    %v1256 = vpack.c.b16 %v852, %v848
    %v1257 = vpack.c.b16 %v853, %v849
    %v1258 = vpack.c.b16 %v854, %v850
    %v1259 = vpack.c.b16 %v855, %v851
    %v1260 = vpack.c.b16 %v860, %v856
    %v1261 = vpack.c.b16 %v861, %v857
    %v1262 = vpack.c.b16 %v862, %v858
    %v1263 = vpack.c.b16 %v863, %v859
    %v1264 = vpack.c.b16 %v868, %v864
    %v1265 = vpack.c.b16 %v869, %v865
    %v1266 = vpack.c.b16 %v870, %v866
    %v1267 = vpack.c.b16 %v871, %v867
    %v1268 = vpack.c.b16 %v876, %v872
    %v1269 = vpack.c.b16 %v877, %v873
    %v1270 = vpack.c.b16 %v878, %v874
    %v1271 = vpack.c.b16 %v879, %v875
    %v1272 = vpack.c.b16 %v884, %v880
    %v1273 = vpack.c.b16 %v885, %v881
    %v1274 = vpack.c.b16 %v886, %v882
    %v1275 = vpack.c.b16 %v887, %v883
    %v1276 = vpack.c.b16 %v892, %v888
    %v1277 = vpack.c.b16 %v893, %v889
    %v1278 = vpack.c.b16 %v894, %v890
    %v1279 = vpack.c.b16 %v895, %v891
    %v1280 = vpack.c.b16 %v900, %v896
    %v1281 = vpack.c.b16 %v901, %v897
    %v1282 = vpack.c.b16 %v902, %v898
    %v1283 = vpack.c.b16 %v903, %v899
    %v1284 = vpack.c.b16 %v908, %v904
    %v1285 = vpack.c.b16 %v909, %v905
    %v1286 = vpack.c.b16 %v910, %v906
    %v1287 = vpack.c.b16 %v911, %v907
    %v1288 = vpack.c.b16 %v916, %v912
    %v1289 = vpack.c.b16 %v917, %v913
    %v1290 = vpack.c.b16 %v918, %v914
    %v1291 = vpack.c.b16 %v919, %v915
    %v1292 = vpack.c.b16 %v924, %v920
    %v1293 = vpack.c.b16 %v925, %v921
    %v1294 = vpack.c.b16 %v926, %v922
    %v1295 = vpack.c.b16 %v927, %v923
    %v1296 = vpack.c.b16 %v932, %v928
    %v1297 = vpack.c.b16 %v933, %v929
    %v1298 = vpack.c.b16 %v934, %v930
    %v1299 = vpack.c.b16 %v935, %v931
    %v1300 = vpack.c.b16 %v940, %v936
    %v1301 = vpack.c.b16 %v941, %v937
    %v1302 = vpack.c.b16 %v942, %v938
    %v1303 = vpack.c.b16 %v943, %v939
    %v1304 = vpack.c.b16 %v948, %v944
    %v1305 = vpack.c.b16 %v949, %v945
    %v1306 = vpack.c.b16 %v950, %v946
    %v1307 = vpack.c.b16 %v951, %v947
    %v1308 = vpack.c.b16 %v956, %v952
    %v1309 = vpack.c.b16 %v957, %v953
    %v1310 = vpack.c.b16 %v958, %v954
    %v1311 = vpack.c.b16 %v959, %v955
    %v1312 = vpack.c.b16 %v964, %v960
    %v1313 = vpack.c.b16 %v965, %v961
    %v1314 = vpack.c.b16 %v966, %v962
    %v1315 = vpack.c.b16 %v967, %v963
    %v1316 = vpack.c.b16 %v972, %v968
    %v1317 = vpack.c.b16 %v973, %v969
    %v1318 = vpack.c.b16 %v974, %v970
    %v1319 = vpack.c.b16 %v975, %v971
    %v1320 = vpack.c.b16 %v980, %v976
    %v1321 = vpack.c.b16 %v981, %v977
    %v1322 = vpack.c.b16 %v982, %v978
    %v1323 = vpack.c.b16 %v983, %v979
    %v1324 = vpack.c.b16 %v988, %v984
    %v1325 = vpack.c.b16 %v989, %v985
    %v1326 = vpack.c.b16 %v990, %v986
    %v1327 = vpack.c.b16 %v991, %v987
    %v1328 = vpack.c.b16 %v996, %v992
    %v1329 = vpack.c.b16 %v997, %v993
    %v1330 = vpack.c.b16 %v998, %v994
    %v1331 = vpack.c.b16 %v999, %v995
    %v1332 = vpack.c.b16 %v1004, %v1000
    %v1333 = vpack.c.b16 %v1005, %v1001
    %v1334 = vpack.c.b16 %v1006, %v1002
    %v1335 = vpack.c.b16 %v1007, %v1003
    %v1336 = vpack.c.b16 %v1012, %v1008
    %v1337 = vpack.c.b16 %v1013, %v1009
    %v1338 = vpack.c.b16 %v1014, %v1010
    %v1339 = vpack.c.b16 %v1015, %v1011
    %v1340 = vpack.c.b16 %v1020, %v1016
    %v1341 = vpack.c.b16 %v1021, %v1017
    %v1342 = vpack.c.b16 %v1022, %v1018
    %v1343 = vpack.c.b16 %v1023, %v1019
    %v1344 = vpack.c.b16 %v1028, %v1024
    %v1345 = vpack.c.b16 %v1029, %v1025
    %v1346 = vpack.c.b16 %v1030, %v1026
    %v1347 = vpack.c.b16 %v1031, %v1027
    %v1348 = vpack.c.b16 %v1036, %v1032
    %v1349 = vpack.c.b16 %v1037, %v1033
    %v1350 = vpack.c.b16 %v1038, %v1034
    %v1351 = vpack.c.b16 %v1039, %v1035
    %v1352 = vpack.c.b16 %v1044, %v1040
    %v1353 = vpack.c.b16 %v1045, %v1041
    %v1354 = vpack.c.b16 %v1046, %v1042
    %v1355 = vpack.c.b16 %v1047, %v1043
    %v1356 = vpack.c.b16 %v1052, %v1048
    %v1357 = vpack.c.b16 %v1053, %v1049
    %v1358 = vpack.c.b16 %v1054, %v1050
    %v1359 = vpack.c.b16 %v1055, %v1051
    %v1360 = vpack.c.b16 %v1060, %v1056
    %v1361 = vpack.c.b16 %v1061, %v1057
    %v1362 = vpack.c.b16 %v1062, %v1058
    %v1363 = vpack.c.b16 %v1063, %v1059
    %v1364 = vpack.c.b16 %v1068, %v1064
    %v1365 = vpack.c.b16 %v1069, %v1065
    %v1366 = vpack.c.b16 %v1070, %v1066
    %v1367 = vpack.c.b16 %v1071, %v1067
    %v1368 = vpack.c.b16 %v1076, %v1072
    %v1369 = vpack.c.b16 %v1077, %v1073
    %v1370 = vpack.c.b16 %v1078, %v1074
    %v1371 = vpack.c.b16 %v1079, %v1075
    %v1372 = vpack.c.b16 %v1084, %v1080
    %v1373 = vpack.c.b16 %v1085, %v1081
    %v1374 = vpack.c.b16 %v1086, %v1082
    %v1375 = vpack.c.b16 %v1087, %v1083
    %v1376 = vpack.c.b16 %v1092, %v1088
    %v1377 = vpack.c.b16 %v1093, %v1089
    %v1378 = vpack.c.b16 %v1094, %v1090
    %v1379 = vpack.c.b16 %v1095, %v1091
    %v1380 = vpack.c.b16 %v1100, %v1096
    %v1381 = vpack.c.b16 %v1101, %v1097
    %v1382 = vpack.c.b16 %v1102, %v1098
    %v1383 = vpack.c.b16 %v1103, %v1099
    %v1384 = vpack.c.b16 %v1108, %v1104
    %v1385 = vpack.c.b16 %v1109, %v1105
    %v1386 = vpack.c.b16 %v1110, %v1106
    %v1387 = vpack.c.b16 %v1111, %v1107
    %v1388 = vpack.c.b16 %v1116, %v1112
    %v1389 = vpack.c.b16 %v1117, %v1113
    %v1390 = vpack.c.b16 %v1118, %v1114
    %v1391 = vpack.c.b16 %v1119, %v1115
    %v1392 = vpack.c.b16 %v1124, %v1120
    %v1393 = vpack.c.b16 %v1125, %v1121
    %v1394 = vpack.c.b16 %v1126, %v1122
    %v1395 = vpack.c.b16 %v1127, %v1123
    %v1396 = vpack.c.b16 %v1132, %v1128
    %v1397 = vpack.c.b16 %v1133, %v1129
    %v1398 = vpack.c.b16 %v1134, %v1130
    %v1399 = vpack.c.b16 %v1135, %v1131
    %v1400 = vpack.c.b16 %v1140, %v1136
    %v1401 = vpack.c.b16 %v1141, %v1137
    %v1402 = vpack.c.b16 %v1142, %v1138
    %v1403 = vpack.c.b16 %v1143, %v1139
    %v1404 = vpack.c.b16 %v1148, %v1144
    %v1405 = vpack.c.b16 %v1149, %v1145
    %v1406 = vpack.c.b16 %v1150, %v1146
    %v1407 = vpack.c.b16 %v1151, %v1147
    %1664 = vmatpush.bf16.msra.mxu0 %v1180
    %1665 = vmatpush.bf16.msra.mxu0 %v1176
    %1666 = vmatpush.bf16.msra.mxu0 %v1172
    %1667 = vmatpush.bf16.msra.mxu0 %v1168
    %1668 = vmatpush.bf16.msra.mxu0 %v1164
    %1669 = vmatpush.bf16.msra.mxu0 %v1160
    %1670 = vmatpush.bf16.msra.mxu0 %v1156
    %1671 = vmatpush.bf16.msra.mxu0 %v1152
    %1672 = vmatmul.bf16.gmra.mxu0 %v368
    %v1673 = vpop.f32.mrf.mxu0
    %v1674 = vadd.f32 %v348, %v1673
    %v1675 = vpop.f32.mrf.mxu0
    %1676 = vdwg.mxu0
    %1677 = vmatpush.bf16.msra.mxu0 %v1212
    %1678 = vmatpush.bf16.msra.mxu0 %v1208
    %1679 = vmatpush.bf16.msra.mxu0 %v1204
    %1680 = vmatpush.bf16.msra.mxu0 %v1200
    %1681 = vmatpush.bf16.msra.mxu0 %v1196
    %1682 = vmatpush.bf16.msra.mxu0 %v1192
    %1683 = vmatpush.bf16.msra.mxu0 %v1188
    %1684 = vmatpush.bf16.msra.mxu0 %v1184
    %1685 = vmatmul.bf16.gmra.mxu0 %v369
    %v1686 = vpop.f32.mrf.mxu0
    %v1687 = vadd.f32 %v1674, %v1686
    %v1688 = vpop.f32.mrf.mxu0
    %1689 = vdwg.mxu0
    %1690 = vmatpush.bf16.msra.mxu0 %v1244
    %1691 = vmatpush.bf16.msra.mxu0 %v1240
    %1692 = vmatpush.bf16.msra.mxu0 %v1236
    %1693 = vmatpush.bf16.msra.mxu0 %v1232
    %1694 = vmatpush.bf16.msra.mxu0 %v1228
    %1695 = vmatpush.bf16.msra.mxu0 %v1224
    %1696 = vmatpush.bf16.msra.mxu0 %v1220
    %1697 = vmatpush.bf16.msra.mxu0 %v1216
    %1698 = vmatmul.bf16.gmra.mxu0 %v370
    %v1699 = vpop.f32.mrf.mxu0
    %v1700 = vadd.f32 %v1687, %v1699
    %v1701 = vpop.f32.mrf.mxu0
    %1702 = vdwg.mxu0
    %1703 = vmatpush.bf16.msra.mxu0 %v1276
    %1704 = vmatpush.bf16.msra.mxu0 %v1272
    %1705 = vmatpush.bf16.msra.mxu0 %v1268
    %1706 = vmatpush.bf16.msra.mxu0 %v1264
    %1707 = vmatpush.bf16.msra.mxu0 %v1260
    %1708 = vmatpush.bf16.msra.mxu0 %v1256
    %1709 = vmatpush.bf16.msra.mxu0 %v1252
    %1710 = vmatpush.bf16.msra.mxu0 %v1248
    %1711 = vmatmul.bf16.gmra.mxu0 %v371
    %v1712 = vpop.f32.mrf.mxu0
    %v1713 = vadd.f32 %v1700, %v1712
    %v1714 = vpop.f32.mrf.mxu0
    %1715 = vdwg.mxu0
    %1716 = vmatpush.bf16.msra.mxu0 %v1308
    %1717 = vmatpush.bf16.msra.mxu0 %v1304
    %1718 = vmatpush.bf16.msra.mxu0 %v1300
    %1719 = vmatpush.bf16.msra.mxu0 %v1296
    %1720 = vmatpush.bf16.msra.mxu0 %v1292
    %1721 = vmatpush.bf16.msra.mxu0 %v1288
    %1722 = vmatpush.bf16.msra.mxu0 %v1284
    %1723 = vmatpush.bf16.msra.mxu0 %v1280
    %1724 = vmatmul.bf16.gmra.mxu0 %v372
    %v1725 = vpop.f32.mrf.mxu0
    %v1726 = vadd.f32 %v1713, %v1725
    %v1727 = vpop.f32.mrf.mxu0
    %1728 = vdwg.mxu0
    %1729 = vmatpush.bf16.msra.mxu0 %v1340
    %1730 = vmatpush.bf16.msra.mxu0 %v1336
    %1731 = vmatpush.bf16.msra.mxu0 %v1332
    %1732 = vmatpush.bf16.msra.mxu0 %v1328
    %1733 = vmatpush.bf16.msra.mxu0 %v1324
    %1734 = vmatpush.bf16.msra.mxu0 %v1320
    %1735 = vmatpush.bf16.msra.mxu0 %v1316
    %1736 = vmatpush.bf16.msra.mxu0 %v1312
    %1737 = vmatmul.bf16.gmra.mxu0 %v373
    %v1738 = vpop.f32.mrf.mxu0
    %v1739 = vadd.f32 %v1726, %v1738
    %v1740 = vpop.f32.mrf.mxu0
    %1741 = vdwg.mxu0
    %1742 = vmatpush.bf16.msra.mxu0 %v1372
    %1743 = vmatpush.bf16.msra.mxu0 %v1368
    %1744 = vmatpush.bf16.msra.mxu0 %v1364
    %1745 = vmatpush.bf16.msra.mxu0 %v1360
    %1746 = vmatpush.bf16.msra.mxu0 %v1356
    %1747 = vmatpush.bf16.msra.mxu0 %v1352
    %1748 = vmatpush.bf16.msra.mxu0 %v1348
    %1749 = vmatpush.bf16.msra.mxu0 %v1344
    %1750 = vmatmul.bf16.gmra.mxu0 %v374
    %v1751 = vpop.f32.mrf.mxu0
    %v1752 = vadd.f32 %v1739, %v1751
    %v1753 = vpop.f32.mrf.mxu0
    %1754 = vdwg.mxu0
    %1755 = vmatpush.bf16.msra.mxu0 %v1404
    %1756 = vmatpush.bf16.msra.mxu0 %v1400
    %1757 = vmatpush.bf16.msra.mxu0 %v1396
    %1758 = vmatpush.bf16.msra.mxu0 %v1392
    %1759 = vmatpush.bf16.msra.mxu0 %v1388
    %1760 = vmatpush.bf16.msra.mxu0 %v1384
    %1761 = vmatpush.bf16.msra.mxu0 %v1380
    %1762 = vmatpush.bf16.msra.mxu0 %v1376
    %1763 = vmatmul.bf16.gmra.mxu0 %v375
    %v1764 = vpop.f32.mrf.mxu0
    %v1765 = vadd.f32 %v1752, %v1764
    %v1766 = vpop.f32.mrf.mxu0
    %1767 = vdwg.mxu0
    %1768 = vmatpush.bf16.msra.mxu0 %v1181
    %1769 = vmatpush.bf16.msra.mxu0 %v1177
    %1770 = vmatpush.bf16.msra.mxu0 %v1173
    %1771 = vmatpush.bf16.msra.mxu0 %v1169
    %1772 = vmatpush.bf16.msra.mxu0 %v1165
    %1773 = vmatpush.bf16.msra.mxu0 %v1161
    %1774 = vmatpush.bf16.msra.mxu0 %v1157
    %1775 = vmatpush.bf16.msra.mxu0 %v1153
    %1776 = vmatmul.bf16.gmra.mxu0 %v368
    %v1777 = vpop.f32.mrf.mxu0
    %v1778 = vadd.f32 %v349, %v1777
    %v1779 = vpop.f32.mrf.mxu0
    %1780 = vdwg.mxu0
    %1781 = vmatpush.bf16.msra.mxu0 %v1213
    %1782 = vmatpush.bf16.msra.mxu0 %v1209
    %1783 = vmatpush.bf16.msra.mxu0 %v1205
    %1784 = vmatpush.bf16.msra.mxu0 %v1201
    %1785 = vmatpush.bf16.msra.mxu0 %v1197
    %1786 = vmatpush.bf16.msra.mxu0 %v1193
    %1787 = vmatpush.bf16.msra.mxu0 %v1189
    %1788 = vmatpush.bf16.msra.mxu0 %v1185
    %1789 = vmatmul.bf16.gmra.mxu0 %v369
    %v1790 = vpop.f32.mrf.mxu0
    %v1791 = vadd.f32 %v1778, %v1790
    %v1792 = vpop.f32.mrf.mxu0
    %1793 = vdwg.mxu0
    %1794 = vmatpush.bf16.msra.mxu0 %v1245
    %1795 = vmatpush.bf16.msra.mxu0 %v1241
    %1796 = vmatpush.bf16.msra.mxu0 %v1237
    %1797 = vmatpush.bf16.msra.mxu0 %v1233
    %1798 = vmatpush.bf16.msra.mxu0 %v1229
    %1799 = vmatpush.bf16.msra.mxu0 %v1225
    %1800 = vmatpush.bf16.msra.mxu0 %v1221
    %1801 = vmatpush.bf16.msra.mxu0 %v1217
    %1802 = vmatmul.bf16.gmra.mxu0 %v370
    %v1803 = vpop.f32.mrf.mxu0
    %v1804 = vadd.f32 %v1791, %v1803
    %v1805 = vpop.f32.mrf.mxu0
    %1806 = vdwg.mxu0
    %1807 = vmatpush.bf16.msra.mxu0 %v1277
    %1808 = vmatpush.bf16.msra.mxu0 %v1273
    %1809 = vmatpush.bf16.msra.mxu0 %v1269
    %1810 = vmatpush.bf16.msra.mxu0 %v1265
    %1811 = vmatpush.bf16.msra.mxu0 %v1261
    %1812 = vmatpush.bf16.msra.mxu0 %v1257
    %1813 = vmatpush.bf16.msra.mxu0 %v1253
    %1814 = vmatpush.bf16.msra.mxu0 %v1249
    %1815 = vmatmul.bf16.gmra.mxu0 %v371
    %v1816 = vpop.f32.mrf.mxu0
    %v1817 = vadd.f32 %v1804, %v1816
    %v1818 = vpop.f32.mrf.mxu0
    %1819 = vdwg.mxu0
    %1820 = vmatpush.bf16.msra.mxu0 %v1309
    %1821 = vmatpush.bf16.msra.mxu0 %v1305
    %1822 = vmatpush.bf16.msra.mxu0 %v1301
    %1823 = vmatpush.bf16.msra.mxu0 %v1297
    %1824 = vmatpush.bf16.msra.mxu0 %v1293
    %1825 = vmatpush.bf16.msra.mxu0 %v1289
    %1826 = vmatpush.bf16.msra.mxu0 %v1285
    %1827 = vmatpush.bf16.msra.mxu0 %v1281
    %1828 = vmatmul.bf16.gmra.mxu0 %v372
    %v1829 = vpop.f32.mrf.mxu0
    %v1830 = vadd.f32 %v1817, %v1829
    %v1831 = vpop.f32.mrf.mxu0
    %1832 = vdwg.mxu0
    %1833 = vmatpush.bf16.msra.mxu0 %v1341
    %1834 = vmatpush.bf16.msra.mxu0 %v1337
    %1835 = vmatpush.bf16.msra.mxu0 %v1333
    %1836 = vmatpush.bf16.msra.mxu0 %v1329
    %1837 = vmatpush.bf16.msra.mxu0 %v1325
    %1838 = vmatpush.bf16.msra.mxu0 %v1321
    %1839 = vmatpush.bf16.msra.mxu0 %v1317
    %1840 = vmatpush.bf16.msra.mxu0 %v1313
    %1841 = vmatmul.bf16.gmra.mxu0 %v373
    %v1842 = vpop.f32.mrf.mxu0
    %v1843 = vadd.f32 %v1830, %v1842
    %v1844 = vpop.f32.mrf.mxu0
    %1845 = vdwg.mxu0
    %1846 = vmatpush.bf16.msra.mxu0 %v1373
    %1847 = vmatpush.bf16.msra.mxu0 %v1369
    %1848 = vmatpush.bf16.msra.mxu0 %v1365
    %1849 = vmatpush.bf16.msra.mxu0 %v1361
    %1850 = vmatpush.bf16.msra.mxu0 %v1357
    %1851 = vmatpush.bf16.msra.mxu0 %v1353
    %1852 = vmatpush.bf16.msra.mxu0 %v1349
    %1853 = vmatpush.bf16.msra.mxu0 %v1345
    %1854 = vmatmul.bf16.gmra.mxu0 %v374
    %v1855 = vpop.f32.mrf.mxu0
    %v1856 = vadd.f32 %v1843, %v1855
    %v1857 = vpop.f32.mrf.mxu0
    %1858 = vdwg.mxu0
    %1859 = vmatpush.bf16.msra.mxu0 %v1405
    %1860 = vmatpush.bf16.msra.mxu0 %v1401
    %1861 = vmatpush.bf16.msra.mxu0 %v1397
    %1862 = vmatpush.bf16.msra.mxu0 %v1393
    %1863 = vmatpush.bf16.msra.mxu0 %v1389
    %1864 = vmatpush.bf16.msra.mxu0 %v1385
    %1865 = vmatpush.bf16.msra.mxu0 %v1381
    %1866 = vmatpush.bf16.msra.mxu0 %v1377
    %1867 = vmatmul.bf16.gmra.mxu0 %v375
    %v1868 = vpop.f32.mrf.mxu0
    %v1869 = vadd.f32 %v1856, %v1868
    %v1870 = vpop.f32.mrf.mxu0
    %1871 = vdwg.mxu0
    %1872 = vmatpush.bf16.msra.mxu0 %v1182
    %1873 = vmatpush.bf16.msra.mxu0 %v1178
    %1874 = vmatpush.bf16.msra.mxu0 %v1174
    %1875 = vmatpush.bf16.msra.mxu0 %v1170
    %1876 = vmatpush.bf16.msra.mxu0 %v1166
    %1877 = vmatpush.bf16.msra.mxu0 %v1162
    %1878 = vmatpush.bf16.msra.mxu0 %v1158
    %1879 = vmatpush.bf16.msra.mxu0 %v1154
    %1880 = vmatmul.bf16.gmra.mxu0 %v368
    %v1881 = vpop.f32.mrf.mxu0
    %v1882 = vadd.f32 %v350, %v1881
    %v1883 = vpop.f32.mrf.mxu0
    %1884 = vdwg.mxu0
    %1885 = vmatpush.bf16.msra.mxu0 %v1214
    %1886 = vmatpush.bf16.msra.mxu0 %v1210
    %1887 = vmatpush.bf16.msra.mxu0 %v1206
    %1888 = vmatpush.bf16.msra.mxu0 %v1202
    %1889 = vmatpush.bf16.msra.mxu0 %v1198
    %1890 = vmatpush.bf16.msra.mxu0 %v1194
    %1891 = vmatpush.bf16.msra.mxu0 %v1190
    %1892 = vmatpush.bf16.msra.mxu0 %v1186
    %1893 = vmatmul.bf16.gmra.mxu0 %v369
    %v1894 = vpop.f32.mrf.mxu0
    %v1895 = vadd.f32 %v1882, %v1894
    %v1896 = vpop.f32.mrf.mxu0
    %1897 = vdwg.mxu0
    %1898 = vmatpush.bf16.msra.mxu0 %v1246
    %1899 = vmatpush.bf16.msra.mxu0 %v1242
    %1900 = vmatpush.bf16.msra.mxu0 %v1238
    %1901 = vmatpush.bf16.msra.mxu0 %v1234
    %1902 = vmatpush.bf16.msra.mxu0 %v1230
    %1903 = vmatpush.bf16.msra.mxu0 %v1226
    %1904 = vmatpush.bf16.msra.mxu0 %v1222
    %1905 = vmatpush.bf16.msra.mxu0 %v1218
    %1906 = vmatmul.bf16.gmra.mxu0 %v370
    %v1907 = vpop.f32.mrf.mxu0
    %v1908 = vadd.f32 %v1895, %v1907
    %v1909 = vpop.f32.mrf.mxu0
    %1910 = vdwg.mxu0
    %1911 = vmatpush.bf16.msra.mxu0 %v1278
    %1912 = vmatpush.bf16.msra.mxu0 %v1274
    %1913 = vmatpush.bf16.msra.mxu0 %v1270
    %1914 = vmatpush.bf16.msra.mxu0 %v1266
    %1915 = vmatpush.bf16.msra.mxu0 %v1262
    %1916 = vmatpush.bf16.msra.mxu0 %v1258
    %1917 = vmatpush.bf16.msra.mxu0 %v1254
    %1918 = vmatpush.bf16.msra.mxu0 %v1250
    %1919 = vmatmul.bf16.gmra.mxu0 %v371
    %v1920 = vpop.f32.mrf.mxu0
    %v1921 = vadd.f32 %v1908, %v1920
    %v1922 = vpop.f32.mrf.mxu0
    %1923 = vdwg.mxu0
    %1924 = vmatpush.bf16.msra.mxu0 %v1310
    %1925 = vmatpush.bf16.msra.mxu0 %v1306
    %1926 = vmatpush.bf16.msra.mxu0 %v1302
    %1927 = vmatpush.bf16.msra.mxu0 %v1298
    %1928 = vmatpush.bf16.msra.mxu0 %v1294
    %1929 = vmatpush.bf16.msra.mxu0 %v1290
    %1930 = vmatpush.bf16.msra.mxu0 %v1286
    %1931 = vmatpush.bf16.msra.mxu0 %v1282
    %1932 = vmatmul.bf16.gmra.mxu0 %v372
    %v1933 = vpop.f32.mrf.mxu0
    %v1934 = vadd.f32 %v1921, %v1933
    %v1935 = vpop.f32.mrf.mxu0
    %1936 = vdwg.mxu0
    %1937 = vmatpush.bf16.msra.mxu0 %v1342
    %1938 = vmatpush.bf16.msra.mxu0 %v1338
    %1939 = vmatpush.bf16.msra.mxu0 %v1334
    %1940 = vmatpush.bf16.msra.mxu0 %v1330
    %1941 = vmatpush.bf16.msra.mxu0 %v1326
    %1942 = vmatpush.bf16.msra.mxu0 %v1322
    %1943 = vmatpush.bf16.msra.mxu0 %v1318
    %1944 = vmatpush.bf16.msra.mxu0 %v1314
    %1945 = vmatmul.bf16.gmra.mxu0 %v373
    %v1946 = vpop.f32.mrf.mxu0
    %v1947 = vadd.f32 %v1934, %v1946
    %v1948 = vpop.f32.mrf.mxu0
    %1949 = vdwg.mxu0
    %1950 = vmatpush.bf16.msra.mxu0 %v1374
    %1951 = vmatpush.bf16.msra.mxu0 %v1370
    %1952 = vmatpush.bf16.msra.mxu0 %v1366
    %1953 = vmatpush.bf16.msra.mxu0 %v1362
    %1954 = vmatpush.bf16.msra.mxu0 %v1358
    %1955 = vmatpush.bf16.msra.mxu0 %v1354
    %1956 = vmatpush.bf16.msra.mxu0 %v1350
    %1957 = vmatpush.bf16.msra.mxu0 %v1346
    %1958 = vmatmul.bf16.gmra.mxu0 %v374
    %v1959 = vpop.f32.mrf.mxu0
    %v1960 = vadd.f32 %v1947, %v1959
    %v1961 = vpop.f32.mrf.mxu0
    %1962 = vdwg.mxu0
    %1963 = vmatpush.bf16.msra.mxu0 %v1406
    %1964 = vmatpush.bf16.msra.mxu0 %v1402
    %1965 = vmatpush.bf16.msra.mxu0 %v1398
    %1966 = vmatpush.bf16.msra.mxu0 %v1394
    %1967 = vmatpush.bf16.msra.mxu0 %v1390
    %1968 = vmatpush.bf16.msra.mxu0 %v1386
    %1969 = vmatpush.bf16.msra.mxu0 %v1382
    %1970 = vmatpush.bf16.msra.mxu0 %v1378
    %1971 = vmatmul.bf16.gmra.mxu0 %v375
    %v1972 = vpop.f32.mrf.mxu0
    %v1973 = vadd.f32 %v1960, %v1972
    %v1974 = vpop.f32.mrf.mxu0
    %1975 = vdwg.mxu0
    %1976 = vmatpush.bf16.msra.mxu0 %v1183
    %1977 = vmatpush.bf16.msra.mxu0 %v1179
    %1978 = vmatpush.bf16.msra.mxu0 %v1175
    %1979 = vmatpush.bf16.msra.mxu0 %v1171
    %1980 = vmatpush.bf16.msra.mxu0 %v1167
    %1981 = vmatpush.bf16.msra.mxu0 %v1163
    %1982 = vmatpush.bf16.msra.mxu0 %v1159
    %1983 = vmatpush.bf16.msra.mxu0 %v1155
    %1984 = vmatmul.bf16.gmra.mxu0 %v368
    %v1985 = vpop.f32.mrf.mxu0
    %v1986 = vadd.f32 %v351, %v1985
    %v1987 = vpop.f32.mrf.mxu0
    %1988 = vdwg.mxu0
    %1989 = vmatpush.bf16.msra.mxu0 %v1215
    %1990 = vmatpush.bf16.msra.mxu0 %v1211
    %1991 = vmatpush.bf16.msra.mxu0 %v1207
    %1992 = vmatpush.bf16.msra.mxu0 %v1203
    %1993 = vmatpush.bf16.msra.mxu0 %v1199
    %1994 = vmatpush.bf16.msra.mxu0 %v1195
    %1995 = vmatpush.bf16.msra.mxu0 %v1191
    %1996 = vmatpush.bf16.msra.mxu0 %v1187
    %1997 = vmatmul.bf16.gmra.mxu0 %v369
    %v1998 = vpop.f32.mrf.mxu0
    %v1999 = vadd.f32 %v1986, %v1998
    %v2000 = vpop.f32.mrf.mxu0
    %2001 = vdwg.mxu0
    %2002 = vmatpush.bf16.msra.mxu0 %v1247
    %2003 = vmatpush.bf16.msra.mxu0 %v1243
    %2004 = vmatpush.bf16.msra.mxu0 %v1239
    %2005 = vmatpush.bf16.msra.mxu0 %v1235
    %2006 = vmatpush.bf16.msra.mxu0 %v1231
    %2007 = vmatpush.bf16.msra.mxu0 %v1227
    %2008 = vmatpush.bf16.msra.mxu0 %v1223
    %2009 = vmatpush.bf16.msra.mxu0 %v1219
    %2010 = vmatmul.bf16.gmra.mxu0 %v370
    %v2011 = vpop.f32.mrf.mxu0
    %v2012 = vadd.f32 %v1999, %v2011
    %v2013 = vpop.f32.mrf.mxu0
    %2014 = vdwg.mxu0
    %2015 = vmatpush.bf16.msra.mxu0 %v1279
    %2016 = vmatpush.bf16.msra.mxu0 %v1275
    %2017 = vmatpush.bf16.msra.mxu0 %v1271
    %2018 = vmatpush.bf16.msra.mxu0 %v1267
    %2019 = vmatpush.bf16.msra.mxu0 %v1263
    %2020 = vmatpush.bf16.msra.mxu0 %v1259
    %2021 = vmatpush.bf16.msra.mxu0 %v1255
    %2022 = vmatpush.bf16.msra.mxu0 %v1251
    %2023 = vmatmul.bf16.gmra.mxu0 %v371
    %v2024 = vpop.f32.mrf.mxu0
    %v2025 = vadd.f32 %v2012, %v2024
    %v2026 = vpop.f32.mrf.mxu0
    %2027 = vdwg.mxu0
    %2028 = vmatpush.bf16.msra.mxu0 %v1311
    %2029 = vmatpush.bf16.msra.mxu0 %v1307
    %2030 = vmatpush.bf16.msra.mxu0 %v1303
    %2031 = vmatpush.bf16.msra.mxu0 %v1299
    %2032 = vmatpush.bf16.msra.mxu0 %v1295
    %2033 = vmatpush.bf16.msra.mxu0 %v1291
    %2034 = vmatpush.bf16.msra.mxu0 %v1287
    %2035 = vmatpush.bf16.msra.mxu0 %v1283
    %2036 = vmatmul.bf16.gmra.mxu0 %v372
    %v2037 = vpop.f32.mrf.mxu0
    %v2038 = vadd.f32 %v2025, %v2037
    %v2039 = vpop.f32.mrf.mxu0
    %2040 = vdwg.mxu0
    %2041 = vmatpush.bf16.msra.mxu0 %v1343
    %2042 = vmatpush.bf16.msra.mxu0 %v1339
    %2043 = vmatpush.bf16.msra.mxu0 %v1335
    %2044 = vmatpush.bf16.msra.mxu0 %v1331
    %2045 = vmatpush.bf16.msra.mxu0 %v1327
    %2046 = vmatpush.bf16.msra.mxu0 %v1323
    %2047 = vmatpush.bf16.msra.mxu0 %v1319
    %2048 = vmatpush.bf16.msra.mxu0 %v1315
    %2049 = vmatmul.bf16.gmra.mxu0 %v373
    %v2050 = vpop.f32.mrf.mxu0
    %v2051 = vadd.f32 %v2038, %v2050
    %v2052 = vpop.f32.mrf.mxu0
    %2053 = vdwg.mxu0
    %2054 = vmatpush.bf16.msra.mxu0 %v1375
    %2055 = vmatpush.bf16.msra.mxu0 %v1371
    %2056 = vmatpush.bf16.msra.mxu0 %v1367
    %2057 = vmatpush.bf16.msra.mxu0 %v1363
    %2058 = vmatpush.bf16.msra.mxu0 %v1359
    %2059 = vmatpush.bf16.msra.mxu0 %v1355
    %2060 = vmatpush.bf16.msra.mxu0 %v1351
    %2061 = vmatpush.bf16.msra.mxu0 %v1347
    %2062 = vmatmul.bf16.gmra.mxu0 %v374
    %v2063 = vpop.f32.mrf.mxu0
    %v2064 = vadd.f32 %v2051, %v2063
    %v2065 = vpop.f32.mrf.mxu0
    %2066 = vdwg.mxu0
    %2067 = vmatpush.bf16.msra.mxu0 %v1407
    %2068 = vmatpush.bf16.msra.mxu0 %v1403
    %2069 = vmatpush.bf16.msra.mxu0 %v1399
    %2070 = vmatpush.bf16.msra.mxu0 %v1395
    %2071 = vmatpush.bf16.msra.mxu0 %v1391
    %2072 = vmatpush.bf16.msra.mxu0 %v1387
    %2073 = vmatpush.bf16.msra.mxu0 %v1383
    %2074 = vmatpush.bf16.msra.mxu0 %v1379
    %2075 = vmatmul.bf16.gmra.mxu0 %v375
    %v2076 = vpop.f32.mrf.mxu0
    %v2077 = vadd.f32 %v2064, %v2076
    %v2078 = vpop.f32.mrf.mxu0
    %2079 = vdwg.mxu0
    %vm2080 = vcmp.gt.f32.partialorder %v1765, 0.0
    %vm2081 = vcmp.gt.f32.partialorder %v1869, 0.0
    %vm2082 = vcmp.gt.f32.partialorder %v1973, 0.0
    %vm2083 = vcmp.gt.f32.partialorder %v2077, 0.0
    %v2084 = vmul.f32 %v1765, 0.2
    %v2085 = vmul.f32 %v1869, 0.2
    %v2086 = vmul.f32 %v1973, 0.2
    %v2087 = vmul.f32 %v2077, 0.2
    %v2088 = vsel %vm2080, %v1765, %v2084
    %v2089 = vsel %vm2081, %v1869, %v2085
    %v2090 = vsel %vm2082, %v1973, %v2086
    %v2091 = vsel %vm2083, %v2077, %v2087
    %v2092 = vpack.c.bf16 %v2088, %v2088
    %v2093 = vpack.c.bf16 %v2089, %v2089
    %v2094 = vpack.c.bf16 %v2090, %v2090
    %v2095 = vpack.c.bf16 %v2091, %v2091
    %v2096 = vld [vmem:[#allocation8] sm:$0xff]
    %v2097 = vld [vmem:[#allocation8 + $0x8] sm:$0xff]
    %v2098 = vld [vmem:[#allocation8 + $0x10] sm:$0xff]
    %v2099 = vld [vmem:[#allocation8 + $0x18] sm:$0xff]
    %v2100 = vld [vmem:[#allocation8 + $0x20] sm:$0xff]
    %v2101 = vld [vmem:[#allocation8 + $0x28] sm:$0xff]
    %v2102 = vld [vmem:[#allocation8 + $0x30] sm:$0xff]
    %v2103 = vld [vmem:[#allocation8 + $0x38] sm:$0xff]
    %v2104 = vld [vmem:[#allocation8 + $0x40] sm:$0xff]
    %v2105 = vld [vmem:[#allocation8 + $0x48] sm:$0xff]
    %v2106 = vld [vmem:[#allocation8 + $0x50] sm:$0xff]
    %v2107 = vld [vmem:[#allocation8 + $0x58] sm:$0xff]
    %v2108 = vld [vmem:[#allocation8 + $0x60] sm:$0xff]
    %v2109 = vld [vmem:[#allocation8 + $0x68] sm:$0xff]
    %v2110 = vld [vmem:[#allocation8 + $0x70] sm:$0xff]
    %v2111 = vld [vmem:[#allocation8 + $0x78] sm:$0xff]
    %v2112 = vld [vmem:[#allocation8 + $0x80] sm:$0xff]
    %v2113 = vld [vmem:[#allocation8 + $0x88] sm:$0xff]
    %v2114 = vld [vmem:[#allocation8 + $0x90] sm:$0xff]
    %v2115 = vld [vmem:[#allocation8 + $0x98] sm:$0xff]
    %v2116 = vld [vmem:[#allocation8 + $0xa0] sm:$0xff]
    %v2117 = vld [vmem:[#allocation8 + $0xa8] sm:$0xff]
    %v2118 = vld [vmem:[#allocation8 + $0xb0] sm:$0xff]
    %v2119 = vld [vmem:[#allocation8 + $0xb8] sm:$0xff]
    %v2120 = vld [vmem:[#allocation8 + $0xc0] sm:$0xff]
    %v2121 = vld [vmem:[#allocation8 + $0xc8] sm:$0xff]
    %v2122 = vld [vmem:[#allocation8 + $0xd0] sm:$0xff]
    %v2123 = vld [vmem:[#allocation8 + $0xd8] sm:$0xff]
    %v2124 = vld [vmem:[#allocation8 + $0xe0] sm:$0xff]
    %v2125 = vld [vmem:[#allocation8 + $0xe8] sm:$0xff]
    %v2126 = vld [vmem:[#allocation8 + $0xf0] sm:$0xff]
    %v2127 = vld [vmem:[#allocation8 + $0xf8] sm:$0xff]
    %v2128 = vld [vmem:[#allocation8 + $0x100] sm:$0xff]
    %v2129 = vld [vmem:[#allocation8 + $0x108] sm:$0xff]
    %v2130 = vld [vmem:[#allocation8 + $0x110] sm:$0xff]
    %v2131 = vld [vmem:[#allocation8 + $0x118] sm:$0xff]
    %v2132 = vld [vmem:[#allocation8 + $0x120] sm:$0xff]
    %v2133 = vld [vmem:[#allocation8 + $0x128] sm:$0xff]
    %v2134 = vld [vmem:[#allocation8 + $0x130] sm:$0xff]
    %v2135 = vld [vmem:[#allocation8 + $0x138] sm:$0xff]
    %v2136 = vld [vmem:[#allocation8 + $0x140] sm:$0xff]
    %v2137 = vld [vmem:[#allocation8 + $0x148] sm:$0xff]
    %v2138 = vld [vmem:[#allocation8 + $0x150] sm:$0xff]
    %v2139 = vld [vmem:[#allocation8 + $0x158] sm:$0xff]
    %v2140 = vld [vmem:[#allocation8 + $0x160] sm:$0xff]
    %v2141 = vld [vmem:[#allocation8 + $0x168] sm:$0xff]
    %v2142 = vld [vmem:[#allocation8 + $0x170] sm:$0xff]
    %v2143 = vld [vmem:[#allocation8 + $0x178] sm:$0xff]
    %v2144 = vld [vmem:[#allocation8 + $0x180] sm:$0xff]
    %v2145 = vld [vmem:[#allocation8 + $0x188] sm:$0xff]
    %v2146 = vld [vmem:[#allocation8 + $0x190] sm:$0xff]
    %v2147 = vld [vmem:[#allocation8 + $0x198] sm:$0xff]
    %v2148 = vld [vmem:[#allocation8 + $0x1a0] sm:$0xff]
    %v2149 = vld [vmem:[#allocation8 + $0x1a8] sm:$0xff]
    %v2150 = vld [vmem:[#allocation8 + $0x1b0] sm:$0xff]
    %v2151 = vld [vmem:[#allocation8 + $0x1b8] sm:$0xff]
    %v2152 = vld [vmem:[#allocation8 + $0x1c0] sm:$0xff]
    %v2153 = vld [vmem:[#allocation8 + $0x1c8] sm:$0xff]
    %v2154 = vld [vmem:[#allocation8 + $0x1d0] sm:$0xff]
    %v2155 = vld [vmem:[#allocation8 + $0x1d8] sm:$0xff]
    %v2156 = vld [vmem:[#allocation8 + $0x1e0] sm:$0xff]
    %v2157 = vld [vmem:[#allocation8 + $0x1e8] sm:$0xff]
    %v2158 = vld [vmem:[#allocation8 + $0x1f0] sm:$0xff]
    %v2159 = vld [vmem:[#allocation8 + $0x1f8] sm:$0xff]
    %v2160 = vld [vmem:[%s4] sm:$0x3]
    %v2162 = vperm.slane %v2160, 0
    %v2163 = vperm.slane %v2160, 1
    %v2230 = vunpack.c.l.b16 %v2096
    %v2231 = vunpack.c.h.b16 %v2096
    %v2232 = vunpack.c.l.b16 %v2097
    %v2233 = vunpack.c.h.b16 %v2097
    %v2234 = vunpack.c.l.b16 %v2098
    %v2235 = vunpack.c.h.b16 %v2098
    %v2236 = vunpack.c.l.b16 %v2099
    %v2237 = vunpack.c.h.b16 %v2099
    %v2238 = vunpack.c.l.b16 %v2100
    %v2239 = vunpack.c.h.b16 %v2100
    %v2240 = vunpack.c.l.b16 %v2101
    %v2241 = vunpack.c.h.b16 %v2101
    %v2242 = vunpack.c.l.b16 %v2102
    %v2243 = vunpack.c.h.b16 %v2102
    %v2244 = vunpack.c.l.b16 %v2103
    %v2245 = vunpack.c.h.b16 %v2103
    %v2246 = vunpack.c.l.b16 %v2104
    %v2247 = vunpack.c.h.b16 %v2104
    %v2248 = vunpack.c.l.b16 %v2105
    %v2249 = vunpack.c.h.b16 %v2105
    %v2250 = vunpack.c.l.b16 %v2106
    %v2251 = vunpack.c.h.b16 %v2106
    %v2252 = vunpack.c.l.b16 %v2107
    %v2253 = vunpack.c.h.b16 %v2107
    %v2254 = vunpack.c.l.b16 %v2108
    %v2255 = vunpack.c.h.b16 %v2108
    %v2256 = vunpack.c.l.b16 %v2109
    %v2257 = vunpack.c.h.b16 %v2109
    %v2258 = vunpack.c.l.b16 %v2110
    %v2259 = vunpack.c.h.b16 %v2110
    %v2260 = vunpack.c.l.b16 %v2111
    %v2261 = vunpack.c.h.b16 %v2111
    %v2262 = vunpack.c.l.b16 %v2112
    %v2263 = vunpack.c.h.b16 %v2112
    %v2264 = vunpack.c.l.b16 %v2113
    %v2265 = vunpack.c.h.b16 %v2113
    %v2266 = vunpack.c.l.b16 %v2114
    %v2267 = vunpack.c.h.b16 %v2114
    %v2268 = vunpack.c.l.b16 %v2115
    %v2269 = vunpack.c.h.b16 %v2115
    %v2270 = vunpack.c.l.b16 %v2116
    %v2271 = vunpack.c.h.b16 %v2116
    %v2272 = vunpack.c.l.b16 %v2117
    %v2273 = vunpack.c.h.b16 %v2117
    %v2274 = vunpack.c.l.b16 %v2118
    %v2275 = vunpack.c.h.b16 %v2118
    %v2276 = vunpack.c.l.b16 %v2119
    %v2277 = vunpack.c.h.b16 %v2119
    %v2278 = vunpack.c.l.b16 %v2120
    %v2279 = vunpack.c.h.b16 %v2120
    %v2280 = vunpack.c.l.b16 %v2121
    %v2281 = vunpack.c.h.b16 %v2121
    %v2282 = vunpack.c.l.b16 %v2122
    %v2283 = vunpack.c.h.b16 %v2122
    %v2284 = vunpack.c.l.b16 %v2123
    %v2285 = vunpack.c.h.b16 %v2123
    %v2286 = vunpack.c.l.b16 %v2124
    %v2287 = vunpack.c.h.b16 %v2124
    %v2288 = vunpack.c.l.b16 %v2125
    %v2289 = vunpack.c.h.b16 %v2125
    %v2290 = vunpack.c.l.b16 %v2126
    %v2291 = vunpack.c.h.b16 %v2126
    %v2292 = vunpack.c.l.b16 %v2127
    %v2293 = vunpack.c.h.b16 %v2127
    %v2294 = vunpack.c.l.b16 %v2128
    %v2295 = vunpack.c.h.b16 %v2128
    %v2296 = vunpack.c.l.b16 %v2129
    %v2297 = vunpack.c.h.b16 %v2129
    %v2298 = vunpack.c.l.b16 %v2130
    %v2299 = vunpack.c.h.b16 %v2130
    %v2300 = vunpack.c.l.b16 %v2131
    %v2301 = vunpack.c.h.b16 %v2131
    %v2302 = vunpack.c.l.b16 %v2132
    %v2303 = vunpack.c.h.b16 %v2132
    %v2304 = vunpack.c.l.b16 %v2133
    %v2305 = vunpack.c.h.b16 %v2133
    %v2306 = vunpack.c.l.b16 %v2134
    %v2307 = vunpack.c.h.b16 %v2134
    %v2308 = vunpack.c.l.b16 %v2135
    %v2309 = vunpack.c.h.b16 %v2135
    %v2310 = vunpack.c.l.b16 %v2136
    %v2311 = vunpack.c.h.b16 %v2136
    %v2312 = vunpack.c.l.b16 %v2137
    %v2313 = vunpack.c.h.b16 %v2137
    %v2314 = vunpack.c.l.b16 %v2138
    %v2315 = vunpack.c.h.b16 %v2138
    %v2316 = vunpack.c.l.b16 %v2139
    %v2317 = vunpack.c.h.b16 %v2139
    %v2318 = vunpack.c.l.b16 %v2140
    %v2319 = vunpack.c.h.b16 %v2140
    %v2320 = vunpack.c.l.b16 %v2141
    %v2321 = vunpack.c.h.b16 %v2141
    %v2322 = vunpack.c.l.b16 %v2142
    %v2323 = vunpack.c.h.b16 %v2142
    %v2324 = vunpack.c.l.b16 %v2143
    %v2325 = vunpack.c.h.b16 %v2143
    %v2326 = vunpack.c.l.b16 %v2144
    %v2327 = vunpack.c.h.b16 %v2144
    %v2328 = vunpack.c.l.b16 %v2145
    %v2329 = vunpack.c.h.b16 %v2145
    %v2330 = vunpack.c.l.b16 %v2146
    %v2331 = vunpack.c.h.b16 %v2146
    %v2332 = vunpack.c.l.b16 %v2147
    %v2333 = vunpack.c.h.b16 %v2147
    %v2334 = vunpack.c.l.b16 %v2148
    %v2335 = vunpack.c.h.b16 %v2148
    %v2336 = vunpack.c.l.b16 %v2149
    %v2337 = vunpack.c.h.b16 %v2149
    %v2338 = vunpack.c.l.b16 %v2150
    %v2339 = vunpack.c.h.b16 %v2150
    %v2340 = vunpack.c.l.b16 %v2151
    %v2341 = vunpack.c.h.b16 %v2151
    %v2342 = vunpack.c.l.b16 %v2152
    %v2343 = vunpack.c.h.b16 %v2152
    %v2344 = vunpack.c.l.b16 %v2153
    %v2345 = vunpack.c.h.b16 %v2153
    %v2346 = vunpack.c.l.b16 %v2154
    %v2347 = vunpack.c.h.b16 %v2154
    %v2348 = vunpack.c.l.b16 %v2155
    %v2349 = vunpack.c.h.b16 %v2155
    %v2350 = vunpack.c.l.b16 %v2156
    %v2351 = vunpack.c.h.b16 %v2156
    %v2352 = vunpack.c.l.b16 %v2157
    %v2353 = vunpack.c.h.b16 %v2157
    %v2354 = vunpack.c.l.b16 %v2158
    %v2355 = vunpack.c.h.b16 %v2158
    %v2356 = vunpack.c.l.b16 %v2159
    %v2357 = vunpack.c.h.b16 %v2159
    %v2358 = vpack.c.b16 %v2232, %v2230
    %v2359 = vpack.c.b16 %v2233, %v2231
    %v2360 = vpack.c.b16 %v2236, %v2234
    %v2361 = vpack.c.b16 %v2237, %v2235
    %v2362 = vpack.c.b16 %v2240, %v2238
    %v2363 = vpack.c.b16 %v2241, %v2239
    %v2364 = vpack.c.b16 %v2244, %v2242
    %v2365 = vpack.c.b16 %v2245, %v2243
    %v2366 = vpack.c.b16 %v2248, %v2246
    %v2367 = vpack.c.b16 %v2249, %v2247
    %v2368 = vpack.c.b16 %v2252, %v2250
    %v2369 = vpack.c.b16 %v2253, %v2251
    %v2370 = vpack.c.b16 %v2256, %v2254
    %v2371 = vpack.c.b16 %v2257, %v2255
    %v2372 = vpack.c.b16 %v2260, %v2258
    %v2373 = vpack.c.b16 %v2261, %v2259
    %v2374 = vpack.c.b16 %v2264, %v2262
    %v2375 = vpack.c.b16 %v2265, %v2263
    %v2376 = vpack.c.b16 %v2268, %v2266
    %v2377 = vpack.c.b16 %v2269, %v2267
    %v2378 = vpack.c.b16 %v2272, %v2270
    %v2379 = vpack.c.b16 %v2273, %v2271
    %v2380 = vpack.c.b16 %v2276, %v2274
    %v2381 = vpack.c.b16 %v2277, %v2275
    %v2382 = vpack.c.b16 %v2280, %v2278
    %v2383 = vpack.c.b16 %v2281, %v2279
    %v2384 = vpack.c.b16 %v2284, %v2282
    %v2385 = vpack.c.b16 %v2285, %v2283
    %v2386 = vpack.c.b16 %v2288, %v2286
    %v2387 = vpack.c.b16 %v2289, %v2287
    %v2388 = vpack.c.b16 %v2292, %v2290
    %v2389 = vpack.c.b16 %v2293, %v2291
    %v2390 = vpack.c.b16 %v2296, %v2294
    %v2391 = vpack.c.b16 %v2297, %v2295
    %v2392 = vpack.c.b16 %v2300, %v2298
    %v2393 = vpack.c.b16 %v2301, %v2299
    %v2394 = vpack.c.b16 %v2304, %v2302
    %v2395 = vpack.c.b16 %v2305, %v2303
    %v2396 = vpack.c.b16 %v2308, %v2306
    %v2397 = vpack.c.b16 %v2309, %v2307
    %v2398 = vpack.c.b16 %v2312, %v2310
    %v2399 = vpack.c.b16 %v2313, %v2311
    %v2400 = vpack.c.b16 %v2316, %v2314
    %v2401 = vpack.c.b16 %v2317, %v2315
    %v2402 = vpack.c.b16 %v2320, %v2318
    %v2403 = vpack.c.b16 %v2321, %v2319
    %v2404 = vpack.c.b16 %v2324, %v2322
    %v2405 = vpack.c.b16 %v2325, %v2323
    %v2406 = vpack.c.b16 %v2328, %v2326
    %v2407 = vpack.c.b16 %v2329, %v2327
    %v2408 = vpack.c.b16 %v2332, %v2330
    %v2409 = vpack.c.b16 %v2333, %v2331
    %v2410 = vpack.c.b16 %v2336, %v2334
    %v2411 = vpack.c.b16 %v2337, %v2335
    %v2412 = vpack.c.b16 %v2340, %v2338
    %v2413 = vpack.c.b16 %v2341, %v2339
    %v2414 = vpack.c.b16 %v2344, %v2342
    %v2415 = vpack.c.b16 %v2345, %v2343
    %v2416 = vpack.c.b16 %v2348, %v2346
    %v2417 = vpack.c.b16 %v2349, %v2347
    %v2418 = vpack.c.b16 %v2352, %v2350
    %v2419 = vpack.c.b16 %v2353, %v2351
    %v2420 = vpack.c.b16 %v2356, %v2354
    %v2421 = vpack.c.b16 %v2357, %v2355
    %2486 = vmatpush.bf16.msra.mxu0 %v2372
    %2487 = vmatpush.bf16.msra.mxu0 %v2370
    %2488 = vmatpush.bf16.msra.mxu0 %v2368
    %2489 = vmatpush.bf16.msra.mxu0 %v2366
    %2490 = vmatpush.bf16.msra.mxu0 %v2364
    %2491 = vmatpush.bf16.msra.mxu0 %v2362
    %2492 = vmatpush.bf16.msra.mxu0 %v2360
    %2493 = vmatpush.bf16.msra.mxu0 %v2358
    %2494 = vmatmul.bf16.gmra.mxu0 %v2092
    %v2495 = vpop.f32.mrf.mxu0
    %v2496 = vadd.f32 %v2162, %v2495
    %v2497 = vpop.f32.mrf.mxu0
    %2498 = vdwg.mxu0
    %2499 = vmatpush.bf16.msra.mxu0 %v2388
    %2500 = vmatpush.bf16.msra.mxu0 %v2386
    %2501 = vmatpush.bf16.msra.mxu0 %v2384
    %2502 = vmatpush.bf16.msra.mxu0 %v2382
    %2503 = vmatpush.bf16.msra.mxu0 %v2380
    %2504 = vmatpush.bf16.msra.mxu0 %v2378
    %2505 = vmatpush.bf16.msra.mxu0 %v2376
    %2506 = vmatpush.bf16.msra.mxu0 %v2374
    %2507 = vmatmul.bf16.gmra.mxu0 %v2093
    %v2508 = vpop.f32.mrf.mxu0
    %v2509 = vadd.f32 %v2496, %v2508
    %v2510 = vpop.f32.mrf.mxu0
    %2511 = vdwg.mxu0
    %2512 = vmatpush.bf16.msra.mxu0 %v2404
    %2513 = vmatpush.bf16.msra.mxu0 %v2402
    %2514 = vmatpush.bf16.msra.mxu0 %v2400
    %2515 = vmatpush.bf16.msra.mxu0 %v2398
    %2516 = vmatpush.bf16.msra.mxu0 %v2396
    %2517 = vmatpush.bf16.msra.mxu0 %v2394
    %2518 = vmatpush.bf16.msra.mxu0 %v2392
    %2519 = vmatpush.bf16.msra.mxu0 %v2390
    %2520 = vmatmul.bf16.gmra.mxu0 %v2094
    %v2521 = vpop.f32.mrf.mxu0
    %v2522 = vadd.f32 %v2509, %v2521
    %v2523 = vpop.f32.mrf.mxu0
    %2524 = vdwg.mxu0
    %2525 = vmatpush.bf16.msra.mxu0 %v2420
    %2526 = vmatpush.bf16.msra.mxu0 %v2418
    %2527 = vmatpush.bf16.msra.mxu0 %v2416
    %2528 = vmatpush.bf16.msra.mxu0 %v2414
    %2529 = vmatpush.bf16.msra.mxu0 %v2412
    %2530 = vmatpush.bf16.msra.mxu0 %v2410
    %2531 = vmatpush.bf16.msra.mxu0 %v2408
    %2532 = vmatpush.bf16.msra.mxu0 %v2406
    %2533 = vmatmul.bf16.gmra.mxu0 %v2095
    %v2534 = vpop.f32.mrf.mxu0
    %v2535 = vadd.f32 %v2522, %v2534
    %v2536 = vpop.f32.mrf.mxu0
    %2537 = vdwg.mxu0
    %2538 = vmatpush.bf16.msra.mxu0 %v2373
    %2539 = vmatpush.bf16.msra.mxu0 %v2371
    %2540 = vmatpush.bf16.msra.mxu0 %v2369
    %2541 = vmatpush.bf16.msra.mxu0 %v2367
    %2542 = vmatpush.bf16.msra.mxu0 %v2365
    %2543 = vmatpush.bf16.msra.mxu0 %v2363
    %2544 = vmatpush.bf16.msra.mxu0 %v2361
    %2545 = vmatpush.bf16.msra.mxu0 %v2359
    %2546 = vmatmul.bf16.gmra.mxu0 %v2092
    %v2547 = vpop.f32.mrf.mxu0
    %v2548 = vadd.f32 %v2163, %v2547
    %v2549 = vpop.f32.mrf.mxu0
    %2550 = vdwg.mxu0
    %2551 = vmatpush.bf16.msra.mxu0 %v2389
    %2552 = vmatpush.bf16.msra.mxu0 %v2387
    %2553 = vmatpush.bf16.msra.mxu0 %v2385
    %2554 = vmatpush.bf16.msra.mxu0 %v2383
    %2555 = vmatpush.bf16.msra.mxu0 %v2381
    %2556 = vmatpush.bf16.msra.mxu0 %v2379
    %2557 = vmatpush.bf16.msra.mxu0 %v2377
    %2558 = vmatpush.bf16.msra.mxu0 %v2375
    %2559 = vmatmul.bf16.gmra.mxu0 %v2093
    %v2560 = vpop.f32.mrf.mxu0
    %v2561 = vadd.f32 %v2548, %v2560
    %v2562 = vpop.f32.mrf.mxu0
    %2563 = vdwg.mxu0
    %2564 = vmatpush.bf16.msra.mxu0 %v2405
    %2565 = vmatpush.bf16.msra.mxu0 %v2403
    %2566 = vmatpush.bf16.msra.mxu0 %v2401
    %2567 = vmatpush.bf16.msra.mxu0 %v2399
    %2568 = vmatpush.bf16.msra.mxu0 %v2397
    %2569 = vmatpush.bf16.msra.mxu0 %v2395
    %2570 = vmatpush.bf16.msra.mxu0 %v2393
    %2571 = vmatpush.bf16.msra.mxu0 %v2391
    %2572 = vmatmul.bf16.gmra.mxu0 %v2094
    %v2573 = vpop.f32.mrf.mxu0
    %v2574 = vadd.f32 %v2561, %v2573
    %v2575 = vpop.f32.mrf.mxu0
    %2576 = vdwg.mxu0
    %2577 = vmatpush.bf16.msra.mxu0 %v2421
    %2578 = vmatpush.bf16.msra.mxu0 %v2419
    %2579 = vmatpush.bf16.msra.mxu0 %v2417
    %2580 = vmatpush.bf16.msra.mxu0 %v2415
    %2581 = vmatpush.bf16.msra.mxu0 %v2413
    %2582 = vmatpush.bf16.msra.mxu0 %v2411
    %2583 = vmatpush.bf16.msra.mxu0 %v2409
    %2584 = vmatpush.bf16.msra.mxu0 %v2407
    %2585 = vmatmul.bf16.gmra.mxu0 %v2095
    %v2586 = vpop.f32.mrf.mxu0
    %v2587 = vadd.f32 %v2574, %v2586
    %v2588 = vpop.f32.mrf.mxu0
    %2589 = vdwg.mxu0
    %vm2590 = vcmp.gt.f32.partialorder %v2535, 0.0
    %vm2591 = vcmp.gt.f32.partialorder %v2587, 0.0
    %v2592 = vmul.f32 %v2535, 0.2
    %v2593 = vmul.f32 %v2587, 0.2
    %v2594 = vsel %vm2590, %v2535, %v2592
    %v2595 = vsel %vm2591, %v2587, %v2593
    %v2596 = vld [vmem:[%s5] sm:$0x3]
    %v2598 = vperm.slane %v2596, 0
    %v2599 = vperm.slane %v2596, 1
    %v2602 = vmul.f32 %v2594, %v2598
    %v2603 = vmul.f32 %v2595, %v2599
    %v2604 = vadd.f32 %v2602, %v2603
    %2605 = vadd.xlane.f32.xlu0 %v2604
    %v2606 = vpop.xlane.xlu0 %2605
    %s2607 = sld [smem:[#allocation2]]
    %v2608 = vstv %s2607
    %v2609 = vadd.f32 %v2606, %v2608
    %v2610 = vxor.u32 %v2609, 2147483648
    %v2611 = vmul.f32 %v2610, 1.442695
    %v2612 = vpow.pop %v2611
    %v2613 = vadd.f32 %v2612, 1.0
    %v2614 = vrcp.pop %v2613
    %v2615 = vmul.f32 %v2613, %v2614
    %v2616 = vsub.f32 1.0, %v2615
    %v2617 = vmul.f32 %v2614, %v2616
    %v2618 = vadd.f32 %v2614, %v2617
    %vm2619 = vweird.f32 %v2613
    %vm2620 = vweird.f32 %v2614
    %vm2621 = vmor %vm2619, %vm2620
    %v2622 = vsel %vm2621, %v2614, %v2618
    %v2623 = vand.u32 2147483647, %v2613
    %vm2624 = vcmp.eq.f32.partialorder %v2623, 8.507059e+37
    %v2625 = vand.u32 %v2613, 2147483648
    %v2626 = vor.u32 1.1754944e-38, %v2625
    %v2627 = vsel %vm2624, %v2626, %v2622
    %v2628 = vmul.f32 1.0, %v2627
    %vm2629 = vcmask 7168
    %2630 = vst.msk [vmem:[%s7] sm:$0xff] %vm2629, %v2628
    // Predicated region
    $region46: #{tpu_custom_call.1} parent=1 // pred_check
      _
    $region47: #{tpu_custom_call.1} parent=1 // pred_check_branch
      %2632 = sbr.rel (0) target = $region49
    $region48: #{tpu_custom_call.1} parent=1 // pred_region
      _
    $region49: #{tpu_custom_call.1} parent=1 // pred_fallthru
      _
    // Predicated region
    $region50: #{tpu_custom_call.1} parent=1 // pred_check
      _
    $region51: #{tpu_custom_call.1} parent=1 // pred_check_branch
      %2634 = sbr.rel (0) target = $region53
    $region52: #{tpu_custom_call.1} parent=1 // pred_region
      _
    $region53: #{tpu_custom_call.1} parent=1 // pred_fallthru
      _
    %2635 = vsyncpa [#allocation4], 1
    %2636 = vsyncpa [#allocation6], 1
    %2637 = vsyncpa [#allocation9], 1

</llo_original>
